<compile_context>
chip_gen: v6e
topology: v6e:2x2x1
jax: 0.10.0
libtpu: 0.0.40
codegen_flags: <defaults>
</compile_context>

<pallas_src>
import functools

import jax
import jax.numpy as jnp
from jax.experimental import pallas as pl
from jax.experimental.pallas import tpu as pltpu


def _rnn_classifier_kernel(num_layers, seq_len, batch, row_tile, x_ref, *refs):
    """Multi-layer tanh RNN + linear head, fully VMEM-resident.

    refs layout:
      for each layer l: w_ih_T (in_l, H), w_hh_T (H, H), bias (1, H) [b_ih+b_hh]
      then:             wc_T (H, out_pad), bc (1, out_pad),
                        out_ref (T*B, out_pad), hbuf_ref (T*B, H) scratch.
    x_ref is (T*B, input_size), time-major flattened (rows t*B .. t*B+B-1 are
    timestep t). hbuf_ref holds the current layer's input projection, which is
    then overwritten block-by-block with that layer's hidden states.
    """
    layer_refs = refs[: 3 * num_layers]
    wc_ref, bc_ref, out_ref, hbuf_ref = refs[3 * num_layers:]

    T, B = seq_len, batch
    H = layer_refs[1].shape[0]  # w_hh_T is (H, H)
    n_rows = T * B

    for l in range(num_layers):
        # Load this layer's weights once (stay resident for the whole layer).
        w_ih_T = layer_refs[3 * l][...]
        w_hh_T = layer_refs[3 * l + 1][...]
        bias = layer_refs[3 * l + 2][...]
        in_ref = x_ref if l == 0 else hbuf_ref

        # Batched input projection for ALL timesteps, row-chunked so matmul
        # operands stay a handful of vregs.  Stored into the scratch; for
        # l > 0 this is an in-place rewrite (chunk read precedes the store).
        for r0 in range(0, n_rows, row_tile):
            rows = min(row_tile, n_rows - r0)
            chunk = in_ref[pl.ds(r0, rows), :]
            hbuf_ref[pl.ds(r0, rows), :] = (
                jnp.dot(chunk, w_ih_T, preferred_element_type=jnp.float32) + bias
            )

        # Serial recurrence: only h @ W_hh + add + tanh per step; hidden state
        # (B, H) is the only carried value.
        def step(t, h):
            r = pl.multiple_of(t * B, 8)  # B is a multiple of 8 sublanes
            pre = hbuf_ref[pl.ds(r, B), :] + jnp.dot(
                h, w_hh_T, preferred_element_type=jnp.float32
            )
            h_new = jnp.tanh(pre)
            hbuf_ref[pl.ds(r, B), :] = h_new  # overwrite proj block with h_t
            return h_new

        jax.lax.fori_loop(0, T, step, jnp.zeros((B, H), jnp.float32), unroll=True)

    # Classifier: row-chunked matmul, lane-dense store (out_pad % 128 == 0).
    wc_T = wc_ref[...]
    bc = bc_ref[...]
    for r0 in range(0, n_rows, row_tile):
        rows = min(row_tile, n_rows - r0)
        h_chunk = hbuf_ref[pl.ds(r0, rows), :]
        out_ref[pl.ds(r0, rows), :] = (
            jnp.dot(h_chunk, wc_T, preferred_element_type=jnp.float32) + bc
        ).astype(out_ref.dtype)


def prepare_params(params):
    """One-time layout transform (hoisted out of the forward path):
    transpose weights, fuse b_ih+b_hh, pad classifier columns to 128 lanes."""
    num_layers = len(params["w_ih"])
    H = params["w_hh"][0].shape[0]
    in_size = params["w_cls"].shape[0]
    out_pad = ((in_size + 127) // 128) * 128

    layers = []
    for l in range(num_layers):
        layers.append((
            jnp.transpose(params["w_ih"][l]),                          # (in_l, H)
            jnp.transpose(params["w_hh"][l]),                          # (H, H)
            (params["b_ih"][l] + params["b_hh"][l]).reshape(1, H),     # fused bias
        ))
    wc_T = jnp.zeros((H, out_pad), jnp.float32).at[:, :in_size].set(
        jnp.transpose(params["w_cls"]))
    bc = jnp.zeros((1, out_pad), jnp.float32).at[:, :in_size].set(
        params["b_cls"].reshape(1, in_size))
    return dict(layers=layers, wc_T=wc_T, bc=bc)


def my_model_forward(x, prep):
    """x: (B, T, input_size) float32 -> (B*T, input_size) float32."""
    B, T, in_size = x.shape
    layers = prep["layers"]
    num_layers = len(layers)
    wc_T, bc = prep["wc_T"], prep["bc"]
    H = wc_T.shape[0]
    out_pad = wc_T.shape[1]

    # Pad batch to a multiple of 8 sublanes; padded rows are independent in the
    # recurrence and get sliced away at the end.
    B_pad = ((B + 7) // 8) * 8
    if B_pad != B:
        x_pad = jnp.zeros((B_pad, T, in_size), x.dtype).at[:B].set(x)
    else:
        x_pad = x

    # Time-major flattened: rows [t*B_pad, (t+1)*B_pad) belong to timestep t.
    x_tm = jnp.transpose(x_pad, (1, 0, 2)).reshape(T * B_pad, in_size)

    n_rows = T * B_pad
    row_tile = min(n_rows, 256)  # MXU-height-sized row chunks (multiple of 8)

    kernel_args = [x_tm]
    for w_ih_T, w_hh_T, bias in layers:
        kernel_args += [w_ih_T, w_hh_T, bias]
    kernel_args += [wc_T, bc]

    # Explicit VMEM budget: whole-array residency (no grid => no double-buffer
    # multiplier); 2x headroom, capped at 64 MiB so it is also safe on v7x.
    footprint = sum(int(a.size) * a.dtype.itemsize for a in kernel_args)
    footprint += n_rows * H * 4          # hbuf scratch
    footprint += n_rows * out_pad * 4    # output slab
    vmem_limit = int(min(max(2 * footprint + (4 << 20), 32 << 20), 64 << 20))

    # NOTE: for large B_pad, add a batch grid (dimension_semantics=("parallel",))
    # so v7x's second TensorCore is used; skipped here (B_pad == 8).
    vmem_spec = pl.BlockSpec(memory_space=pltpu.MemorySpace.VMEM)
    out_flat = pl.pallas_call(
        functools.partial(_rnn_classifier_kernel, num_layers, T, B_pad, row_tile),
        out_shape=jax.ShapeDtypeStruct((n_rows, out_pad), x.dtype),
        in_specs=[vmem_spec] * len(kernel_args),
        out_specs=vmem_spec,
        scratch_shapes=[pltpu.VMEM((n_rows, H), jnp.float32)],
        compiler_params=pltpu.CompilerParams(vmem_limit_bytes=vmem_limit),
    )(*kernel_args)

    # (T*B_pad, out_pad) -> (T, B_pad, out_pad) -> drop pad rows / pad columns
    # -> (B, T, in) -> (B*T, in).  Row order matches torch
    # `output.contiguous().view(-1, H)` (batch-major).
    out = out_flat.reshape(T, B_pad, out_pad)[:, :B, :in_size]
    return jnp.transpose(out, (1, 0, 2)).reshape(B * T, in_size)


def init_params(key, input_size, hidden, num_layers):
    """Deterministic PyTorch-style uniform(-1/sqrt(H), 1/sqrt(H)) init."""
    k = 1.0 / jnp.sqrt(jnp.float32(hidden))
    keys = jax.random.split(key, 4 * num_layers + 2)
    w_ih, w_hh, b_ih, b_hh = [], [], [], []
    for l in range(num_layers):
        in_l = input_size if l == 0 else hidden
        w_ih.append(jax.random.uniform(keys[4 * l + 0], (hidden, in_l), jnp.float32, -k, k))
        w_hh.append(jax.random.uniform(keys[4 * l + 1], (hidden, hidden), jnp.float32, -k, k))
        b_ih.append(jax.random.uniform(keys[4 * l + 2], (hidden,), jnp.float32, -k, k))
        b_hh.append(jax.random.uniform(keys[4 * l + 3], (hidden,), jnp.float32, -k, k))
    w_cls = jax.random.uniform(keys[-2], (input_size, hidden), jnp.float32, -k, k)
    b_cls = jax.random.uniform(keys[-1], (input_size,), jnp.float32, -k, k)
    return dict(w_ih=w_ih, w_hh=w_hh, b_ih=b_ih, b_hh=b_hh, w_cls=w_cls, b_cls=b_cls)


def reference_forward(x, params):
    """Pure-JAX reference matching nn.RNN(tanh, batch_first) + Linear."""
    B, T, in_size = x.shape
    num_layers = len(params["w_ih"])
    H = params["w_hh"][0].shape[0]
    hp = jax.lax.Precision.HIGHEST
    h = [jnp.zeros((B, H), jnp.float32) for _ in range(num_layers)]
    outs = []
    for t in range(T):
        inp = x[:, t, :]
        for l in range(num_layers):
            pre = (jnp.dot(inp, params["w_ih"][l].T, precision=hp) + params["b_ih"][l]
                   + jnp.dot(h[l], params["w_hh"][l].T, precision=hp) + params["b_hh"][l])
            h[l] = jnp.tanh(pre)
            inp = h[l]
        outs.append(inp)
    rnn_out = jnp.stack(outs, axis=1)            # (B, T, H)
    flat = rnn_out.reshape(B * T, H)
    return jnp.dot(flat, params["w_cls"].T, precision=hp) + params["b_cls"]


if __name__ == "__main__":
    B, T = 2, 8
    input_size, hidden, num_layers = 4, 32, 2

    key = jax.random.PRNGKey(0)
    kx, kp = jax.random.split(key)
    x = jax.random.normal(kx, (B, T, input_size), jnp.float32)
    params = init_params(kp, input_size, hidden, num_layers)

    prep = prepare_params(params)            # one-time weight layout transform
    fwd = jax.jit(my_model_forward)
    out = jax.block_until_ready(fwd(x, prep))

    ref = reference_forward(x, params)
    assert out.shape == (B * T, input_size), out.shape
    max_err = float(jnp.max(jnp.abs(out - ref)))
    assert jnp.allclose(out, ref, atol=1e-4, rtol=1e-4), max_err

    print("KERNEL_OK")
</pallas_src>

<mosaic_0001>
module attributes {stable_mosaic.version = 11 : i64} {
  func.func @_rnn_classifier_kernel(%arg0: memref<64x4xf32, #tpu.memory_space<vmem>>, %arg1: memref<4x32xf32, #tpu.memory_space<vmem>>, %arg2: memref<32x32xf32, #tpu.memory_space<vmem>>, %arg3: memref<1x32xf32, #tpu.memory_space<vmem>>, %arg4: memref<32x32xf32, #tpu.memory_space<vmem>>, %arg5: memref<32x32xf32, #tpu.memory_space<vmem>>, %arg6: memref<1x32xf32, #tpu.memory_space<vmem>>, %arg7: memref<32x128xf32, #tpu.memory_space<vmem>>, %arg8: memref<1x128xf32, #tpu.memory_space<vmem>>, %arg9: memref<64x128xf32, #tpu.memory_space<vmem>>, %arg10: memref<64x32xf32, #tpu.memory_space<vmem>>) attributes {dimension_semantics = [], scalar_prefetch = 0 : i64, scratch_operands = 1 : i64, tpu.core_type = #tpu.core_type<tc>} {
    %c0 = arith.constant 0 : index
    %c0_0 = arith.constant 0 : index
    %0 = vector.load %arg1[%c0, %c0_0] : memref<4x32xf32, #tpu.memory_space<vmem>>, vector<4x32xf32>
    %c0_1 = arith.constant 0 : index
    %c0_2 = arith.constant 0 : index
    %1 = vector.load %arg2[%c0_1, %c0_2] : memref<32x32xf32, #tpu.memory_space<vmem>>, vector<32x32xf32>
    %c0_3 = arith.constant 0 : index
    %c0_4 = arith.constant 0 : index
    %2 = vector.load %arg3[%c0_3, %c0_4] : memref<1x32xf32, #tpu.memory_space<vmem>>, vector<1x32xf32>
    %c0_5 = arith.constant 0 : index
    %c0_6 = arith.constant 0 : index
    %3 = vector.load %arg0[%c0_5, %c0_6] : memref<64x4xf32, #tpu.memory_space<vmem>>, vector<64x4xf32>
    %cst = arith.constant dense<0.000000e+00> : vector<64x32xf32>
    %4 = tpu.matmul %3, %0, %cst {dimension_numbers = #tpu.dot_dimension_numbers<[1], [0], [0], [1], [0, 0, 1, 1], [], []>} : vector<64x4xf32>, vector<4x32xf32>, vector<64x32xf32> -> vector<64x32xf32>
    %5 = vector.broadcast %2 : vector<1x32xf32> to vector<64x32xf32>
    %6 = arith.addf %4, %5 : vector<64x32xf32>
    %c0_7 = arith.constant 0 : index
    %c0_8 = arith.constant 0 : index
    %7 = vector.load %arg10[%c0_7, %c0_8] : memref<64x32xf32, #tpu.memory_space<vmem>>, vector<64x32xf32>
    tpu.vector_store %arg10[%c0_7, %c0_8], %6 {strides = array<i32>} : memref<64x32xf32, #tpu.memory_space<vmem>>, vector<64x32xf32>,
    %cst_9 = arith.constant 0.000000e+00 : f32
    %8 = vector.broadcast %cst_9 : f32 to vector<8x32xf32>
    %c0_i32 = arith.constant 0 : i32
    %c8_i32 = arith.constant 8 : i32
    %9 = arith.muli %c0_i32, %c8_i32 : i32
    %10 = tpu.assume_multiple %9, 8 : i32
    %11 = arith.index_cast %10 : i32 to index
    %c0_10 = arith.constant 0 : index
    %12 = vector.load %arg10[%11, %c0_10] : memref<64x32xf32, #tpu.memory_space<vmem>>, vector<8x32xf32>
    %cst_11 = arith.constant dense<0.000000e+00> : vector<8x32xf32>
    %13 = tpu.matmul %8, %1, %cst_11 {dimension_numbers = #tpu.dot_dimension_numbers<[1], [0], [0], [1], [0, 0, 1, 1], [], []>} : vector<8x32xf32>, vector<32x32xf32>, vector<8x32xf32> -> vector<8x32xf32>
    %14 = arith.addf %12, %13 : vector<8x32xf32>
    %15 = math.tanh %14 : vector<8x32xf32>
    %16 = arith.index_cast %10 : i32 to index
    %c0_12 = arith.constant 0 : index
    %17 = vector.load %arg10[%16, %c0_12] : memref<64x32xf32, #tpu.memory_space<vmem>>, vector<8x32xf32>
    tpu.vector_store %arg10[%16, %c0_12], %15 {strides = array<i32>} : memref<64x32xf32, #tpu.memory_space<vmem>>, vector<8x32xf32>,
    %c1_i32 = arith.constant 1 : i32
    %c8_i32_13 = arith.constant 8 : i32
    %18 = arith.muli %c1_i32, %c8_i32_13 : i32
    %19 = tpu.assume_multiple %18, 8 : i32
    %20 = arith.index_cast %19 : i32 to index
    %c0_14 = arith.constant 0 : index
    %21 = vector.load %arg10[%20, %c0_14] : memref<64x32xf32, #tpu.memory_space<vmem>>, vector<8x32xf32>
    %cst_15 = arith.constant dense<0.000000e+00> : vector<8x32xf32>
    %22 = tpu.matmul %15, %1, %cst_15 {dimension_numbers = #tpu.dot_dimension_numbers<[1], [0], [0], [1], [0, 0, 1, 1], [], []>} : vector<8x32xf32>, vector<32x32xf32>, vector<8x32xf32> -> vector<8x32xf32>
    %23 = arith.addf %21, %22 : vector<8x32xf32>
    %24 = math.tanh %23 : vector<8x32xf32>
    %25 = arith.index_cast %19 : i32 to index
    %c0_16 = arith.constant 0 : index
    %26 = vector.load %arg10[%25, %c0_16] : memref<64x32xf32, #tpu.memory_space<vmem>>, vector<8x32xf32>
    tpu.vector_store %arg10[%25, %c0_16], %24 {strides = array<i32>} : memref<64x32xf32, #tpu.memory_space<vmem>>, vector<8x32xf32>,
    %c2_i32 = arith.constant 2 : i32
    %c8_i32_17 = arith.constant 8 : i32
    %27 = arith.muli %c2_i32, %c8_i32_17 : i32
    %28 = tpu.assume_multiple %27, 8 : i32
    %29 = arith.index_cast %28 : i32 to index
    %c0_18 = arith.constant 0 : index
    %30 = vector.load %arg10[%29, %c0_18] : memref<64x32xf32, #tpu.memory_space<vmem>>, vector<8x32xf32>
    %cst_19 = arith.constant dense<0.000000e+00> : vector<8x32xf32>
    %31 = tpu.matmul %24, %1, %cst_19 {dimension_numbers = #tpu.dot_dimension_numbers<[1], [0], [0], [1], [0, 0, 1, 1], [], []>} : vector<8x32xf32>, vector<32x32xf32>, vector<8x32xf32> -> vector<8x32xf32>
    %32 = arith.addf %30, %31 : vector<8x32xf32>
    %33 = math.tanh %32 : vector<8x32xf32>
    %34 = arith.index_cast %28 : i32 to index
    %c0_20 = arith.constant 0 : index
    %35 = vector.load %arg10[%34, %c0_20] : memref<64x32xf32, #tpu.memory_space<vmem>>, vector<8x32xf32>
    tpu.vector_store %arg10[%34, %c0_20], %33 {strides = array<i32>} : memref<64x32xf32, #tpu.memory_space<vmem>>, vector<8x32xf32>,
    %c3_i32 = arith.constant 3 : i32
    %c8_i32_21 = arith.constant 8 : i32
    %36 = arith.muli %c3_i32, %c8_i32_21 : i32
    %37 = tpu.assume_multiple %36, 8 : i32
    %38 = arith.index_cast %37 : i32 to index
    %c0_22 = arith.constant 0 : index
    %39 = vector.load %arg10[%38, %c0_22] : memref<64x32xf32, #tpu.memory_space<vmem>>, vector<8x32xf32>
    %cst_23 = arith.constant dense<0.000000e+00> : vector<8x32xf32>
    %40 = tpu.matmul %33, %1, %cst_23 {dimension_numbers = #tpu.dot_dimension_numbers<[1], [0], [0], [1], [0, 0, 1, 1], [], []>} : vector<8x32xf32>, vector<32x32xf32>, vector<8x32xf32> -> vector<8x32xf32>
    %41 = arith.addf %39, %40 : vector<8x32xf32>
    %42 = math.tanh %41 : vector<8x32xf32>
    %43 = arith.index_cast %37 : i32 to index
    %c0_24 = arith.constant 0 : index
    %44 = vector.load %arg10[%43, %c0_24] : memref<64x32xf32, #tpu.memory_space<vmem>>, vector<8x32xf32>
    tpu.vector_store %arg10[%43, %c0_24], %42 {strides = array<i32>} : memref<64x32xf32, #tpu.memory_space<vmem>>, vector<8x32xf32>,
    %c4_i32 = arith.constant 4 : i32
    %c8_i32_25 = arith.constant 8 : i32
    %45 = arith.muli %c4_i32, %c8_i32_25 : i32
    %46 = tpu.assume_multiple %45, 8 : i32
    %47 = arith.index_cast %46 : i32 to index
    %c0_26 = arith.constant 0 : index
    %48 = vector.load %arg10[%47, %c0_26] : memref<64x32xf32, #tpu.memory_space<vmem>>, vector<8x32xf32>
    %cst_27 = arith.constant dense<0.000000e+00> : vector<8x32xf32>
    %49 = tpu.matmul %42, %1, %cst_27 {dimension_numbers = #tpu.dot_dimension_numbers<[1], [0], [0], [1], [0, 0, 1, 1], [], []>} : vector<8x32xf32>, vector<32x32xf32>, vector<8x32xf32> -> vector<8x32xf32>
    %50 = arith.addf %48, %49 : vector<8x32xf32>
    %51 = math.tanh %50 : vector<8x32xf32>
    %52 = arith.index_cast %46 : i32 to index
    %c0_28 = arith.constant 0 : index
    %53 = vector.load %arg10[%52, %c0_28] : memref<64x32xf32, #tpu.memory_space<vmem>>, vector<8x32xf32>
    tpu.vector_store %arg10[%52, %c0_28], %51 {strides = array<i32>} : memref<64x32xf32, #tpu.memory_space<vmem>>, vector<8x32xf32>,
    %c5_i32 = arith.constant 5 : i32
    %c8_i32_29 = arith.constant 8 : i32
    %54 = arith.muli %c5_i32, %c8_i32_29 : i32
    %55 = tpu.assume_multiple %54, 8 : i32
    %56 = arith.index_cast %55 : i32 to index
    %c0_30 = arith.constant 0 : index
    %57 = vector.load %arg10[%56, %c0_30] : memref<64x32xf32, #tpu.memory_space<vmem>>, vector<8x32xf32>
    %cst_31 = arith.constant dense<0.000000e+00> : vector<8x32xf32>
    %58 = tpu.matmul %51, %1, %cst_31 {dimension_numbers = #tpu.dot_dimension_numbers<[1], [0], [0], [1], [0, 0, 1, 1], [], []>} : vector<8x32xf32>, vector<32x32xf32>, vector<8x32xf32> -> vector<8x32xf32>
    %59 = arith.addf %57, %58 : vector<8x32xf32>
    %60 = math.tanh %59 : vector<8x32xf32>
    %61 = arith.index_cast %55 : i32 to index
    %c0_32 = arith.constant 0 : index
    %62 = vector.load %arg10[%61, %c0_32] : memref<64x32xf32, #tpu.memory_space<vmem>>, vector<8x32xf32>
    tpu.vector_store %arg10[%61, %c0_32], %60 {strides = array<i32>} : memref<64x32xf32, #tpu.memory_space<vmem>>, vector<8x32xf32>,
    %c6_i32 = arith.constant 6 : i32
    %c8_i32_33 = arith.constant 8 : i32
    %63 = arith.muli %c6_i32, %c8_i32_33 : i32
    %64 = tpu.assume_multiple %63, 8 : i32
    %65 = arith.index_cast %64 : i32 to index
    %c0_34 = arith.constant 0 : index
    %66 = vector.load %arg10[%65, %c0_34] : memref<64x32xf32, #tpu.memory_space<vmem>>, vector<8x32xf32>
    %cst_35 = arith.constant dense<0.000000e+00> : vector<8x32xf32>
    %67 = tpu.matmul %60, %1, %cst_35 {dimension_numbers = #tpu.dot_dimension_numbers<[1], [0], [0], [1], [0, 0, 1, 1], [], []>} : vector<8x32xf32>, vector<32x32xf32>, vector<8x32xf32> -> vector<8x32xf32>
    %68 = arith.addf %66, %67 : vector<8x32xf32>
    %69 = math.tanh %68 : vector<8x32xf32>
    %70 = arith.index_cast %64 : i32 to index
    %c0_36 = arith.constant 0 : index
    %71 = vector.load %arg10[%70, %c0_36] : memref<64x32xf32, #tpu.memory_space<vmem>>, vector<8x32xf32>
    tpu.vector_store %arg10[%70, %c0_36], %69 {strides = array<i32>} : memref<64x32xf32, #tpu.memory_space<vmem>>, vector<8x32xf32>,
    %c7_i32 = arith.constant 7 : i32
    %c8_i32_37 = arith.constant 8 : i32
    %72 = arith.muli %c7_i32, %c8_i32_37 : i32
    %73 = tpu.assume_multiple %72, 8 : i32
    %74 = arith.index_cast %73 : i32 to index
    %c0_38 = arith.constant 0 : index
    %75 = vector.load %arg10[%74, %c0_38] : memref<64x32xf32, #tpu.memory_space<vmem>>, vector<8x32xf32>
    %cst_39 = arith.constant dense<0.000000e+00> : vector<8x32xf32>
    %76 = tpu.matmul %69, %1, %cst_39 {dimension_numbers = #tpu.dot_dimension_numbers<[1], [0], [0], [1], [0, 0, 1, 1], [], []>} : vector<8x32xf32>, vector<32x32xf32>, vector<8x32xf32> -> vector<8x32xf32>
    %77 = arith.addf %75, %76 : vector<8x32xf32>
    %78 = math.tanh %77 : vector<8x32xf32>
    %79 = arith.index_cast %73 : i32 to index
    %c0_40 = arith.constant 0 : index
    %80 = vector.load %arg10[%79, %c0_40] : memref<64x32xf32, #tpu.memory_space<vmem>>, vector<8x32xf32>
    tpu.vector_store %arg10[%79, %c0_40], %78 {strides = array<i32>} : memref<64x32xf32, #tpu.memory_space<vmem>>, vector<8x32xf32>,
    %c8_i32_41 = arith.constant 8 : i32
    %c0_42 = arith.constant 0 : index
    %c0_43 = arith.constant 0 : index
    %81 = vector.load %arg4[%c0_42, %c0_43] : memref<32x32xf32, #tpu.memory_space<vmem>>, vector<32x32xf32>
    %c0_44 = arith.constant 0 : index
    %c0_45 = arith.constant 0 : index
    %82 = vector.load %arg5[%c0_44, %c0_45] : memref<32x32xf32, #tpu.memory_space<vmem>>, vector<32x32xf32>
    %c0_46 = arith.constant 0 : index
    %c0_47 = arith.constant 0 : index
    %83 = vector.load %arg6[%c0_46, %c0_47] : memref<1x32xf32, #tpu.memory_space<vmem>>, vector<1x32xf32>
    %c0_48 = arith.constant 0 : index
    %c0_49 = arith.constant 0 : index
    %84 = vector.load %arg10[%c0_48, %c0_49] : memref<64x32xf32, #tpu.memory_space<vmem>>, vector<64x32xf32>
    %cst_50 = arith.constant dense<0.000000e+00> : vector<64x32xf32>
    %85 = tpu.matmul %84, %81, %cst_50 {dimension_numbers = #tpu.dot_dimension_numbers<[1], [0], [0], [1], [0, 0, 1, 1], [], []>} : vector<64x32xf32>, vector<32x32xf32>, vector<64x32xf32> -> vector<64x32xf32>
    %86 = vector.broadcast %83 : vector<1x32xf32> to vector<64x32xf32>
    %87 = arith.addf %85, %86 : vector<64x32xf32>
    %c0_51 = arith.constant 0 : index
    %c0_52 = arith.constant 0 : index
    %88 = vector.load %arg10[%c0_51, %c0_52] : memref<64x32xf32, #tpu.memory_space<vmem>>, vector<64x32xf32>
    tpu.vector_store %arg10[%c0_51, %c0_52], %87 {strides = array<i32>} : memref<64x32xf32, #tpu.memory_space<vmem>>, vector<64x32xf32>,
    %cst_53 = arith.constant 0.000000e+00 : f32
    %89 = vector.broadcast %cst_53 : f32 to vector<8x32xf32>
    %c0_i32_54 = arith.constant 0 : i32
    %c8_i32_55 = arith.constant 8 : i32
    %90 = arith.muli %c0_i32_54, %c8_i32_55 : i32
    %91 = tpu.assume_multiple %90, 8 : i32
    %92 = arith.index_cast %91 : i32 to index
    %c0_56 = arith.constant 0 : index
    %93 = vector.load %arg10[%92, %c0_56] : memref<64x32xf32, #tpu.memory_space<vmem>>, vector<8x32xf32>
    %cst_57 = arith.constant dense<0.000000e+00> : vector<8x32xf32>
    %94 = tpu.matmul %89, %82, %cst_57 {dimension_numbers = #tpu.dot_dimension_numbers<[1], [0], [0], [1], [0, 0, 1, 1], [], []>} : vector<8x32xf32>, vector<32x32xf32>, vector<8x32xf32> -> vector<8x32xf32>
    %95 = arith.addf %93, %94 : vector<8x32xf32>
    %96 = math.tanh %95 : vector<8x32xf32>
    %97 = arith.index_cast %91 : i32 to index
    %c0_58 = arith.constant 0 : index
    %98 = vector.load %arg10[%97, %c0_58] : memref<64x32xf32, #tpu.memory_space<vmem>>, vector<8x32xf32>
    tpu.vector_store %arg10[%97, %c0_58], %96 {strides = array<i32>} : memref<64x32xf32, #tpu.memory_space<vmem>>, vector<8x32xf32>,
    %c1_i32_59 = arith.constant 1 : i32
    %c8_i32_60 = arith.constant 8 : i32
    %99 = arith.muli %c1_i32_59, %c8_i32_60 : i32
    %100 = tpu.assume_multiple %99, 8 : i32
    %101 = arith.index_cast %100 : i32 to index
    %c0_61 = arith.constant 0 : index
    %102 = vector.load %arg10[%101, %c0_61] : memref<64x32xf32, #tpu.memory_space<vmem>>, vector<8x32xf32>
    %cst_62 = arith.constant dense<0.000000e+00> : vector<8x32xf32>
    %103 = tpu.matmul %96, %82, %cst_62 {dimension_numbers = #tpu.dot_dimension_numbers<[1], [0], [0], [1], [0, 0, 1, 1], [], []>} : vector<8x32xf32>, vector<32x32xf32>, vector<8x32xf32> -> vector<8x32xf32>
    %104 = arith.addf %102, %103 : vector<8x32xf32>
    %105 = math.tanh %104 : vector<8x32xf32>
    %106 = arith.index_cast %100 : i32 to index
    %c0_63 = arith.constant 0 : index
    %107 = vector.load %arg10[%106, %c0_63] : memref<64x32xf32, #tpu.memory_space<vmem>>, vector<8x32xf32>
    tpu.vector_store %arg10[%106, %c0_63], %105 {strides = array<i32>} : memref<64x32xf32, #tpu.memory_space<vmem>>, vector<8x32xf32>,
    %c2_i32_64 = arith.constant 2 : i32
    %c8_i32_65 = arith.constant 8 : i32
    %108 = arith.muli %c2_i32_64, %c8_i32_65 : i32
    %109 = tpu.assume_multiple %108, 8 : i32
    %110 = arith.index_cast %109 : i32 to index
    %c0_66 = arith.constant 0 : index
    %111 = vector.load %arg10[%110, %c0_66] : memref<64x32xf32, #tpu.memory_space<vmem>>, vector<8x32xf32>
    %cst_67 = arith.constant dense<0.000000e+00> : vector<8x32xf32>
    %112 = tpu.matmul %105, %82, %cst_67 {dimension_numbers = #tpu.dot_dimension_numbers<[1], [0], [0], [1], [0, 0, 1, 1], [], []>} : vector<8x32xf32>, vector<32x32xf32>, vector<8x32xf32> -> vector<8x32xf32>
    %113 = arith.addf %111, %112 : vector<8x32xf32>
    %114 = math.tanh %113 : vector<8x32xf32>
    %115 = arith.index_cast %109 : i32 to index
    %c0_68 = arith.constant 0 : index
    %116 = vector.load %arg10[%115, %c0_68] : memref<64x32xf32, #tpu.memory_space<vmem>>, vector<8x32xf32>
    tpu.vector_store %arg10[%115, %c0_68], %114 {strides = array<i32>} : memref<64x32xf32, #tpu.memory_space<vmem>>, vector<8x32xf32>,
    %c3_i32_69 = arith.constant 3 : i32
    %c8_i32_70 = arith.constant 8 : i32
    %117 = arith.muli %c3_i32_69, %c8_i32_70 : i32
    %118 = tpu.assume_multiple %117, 8 : i32
    %119 = arith.index_cast %118 : i32 to index
    %c0_71 = arith.constant 0 : index
    %120 = vector.load %arg10[%119, %c0_71] : memref<64x32xf32, #tpu.memory_space<vmem>>, vector<8x32xf32>
    %cst_72 = arith.constant dense<0.000000e+00> : vector<8x32xf32>
    %121 = tpu.matmul %114, %82, %cst_72 {dimension_numbers = #tpu.dot_dimension_numbers<[1], [0], [0], [1], [0, 0, 1, 1], [], []>} : vector<8x32xf32>, vector<32x32xf32>, vector<8x32xf32> -> vector<8x32xf32>
    %122 = arith.addf %120, %121 : vector<8x32xf32>
    %123 = math.tanh %122 : vector<8x32xf32>
    %124 = arith.index_cast %118 : i32 to index
    %c0_73 = arith.constant 0 : index
    %125 = vector.load %arg10[%124, %c0_73] : memref<64x32xf32, #tpu.memory_space<vmem>>, vector<8x32xf32>
    tpu.vector_store %arg10[%124, %c0_73], %123 {strides = array<i32>} : memref<64x32xf32, #tpu.memory_space<vmem>>, vector<8x32xf32>,
    %c4_i32_74 = arith.constant 4 : i32
    %c8_i32_75 = arith.constant 8 : i32
    %126 = arith.muli %c4_i32_74, %c8_i32_75 : i32
    %127 = tpu.assume_multiple %126, 8 : i32
    %128 = arith.index_cast %127 : i32 to index
    %c0_76 = arith.constant 0 : index
    %129 = vector.load %arg10[%128, %c0_76] : memref<64x32xf32, #tpu.memory_space<vmem>>, vector<8x32xf32>
    %cst_77 = arith.constant dense<0.000000e+00> : vector<8x32xf32>
    %130 = tpu.matmul %123, %82, %cst_77 {dimension_numbers = #tpu.dot_dimension_numbers<[1], [0], [0], [1], [0, 0, 1, 1], [], []>} : vector<8x32xf32>, vector<32x32xf32>, vector<8x32xf32> -> vector<8x32xf32>
    %131 = arith.addf %129, %130 : vector<8x32xf32>
    %132 = math.tanh %131 : vector<8x32xf32>
    %133 = arith.index_cast %127 : i32 to index
    %c0_78 = arith.constant 0 : index
    %134 = vector.load %arg10[%133, %c0_78] : memref<64x32xf32, #tpu.memory_space<vmem>>, vector<8x32xf32>
    tpu.vector_store %arg10[%133, %c0_78], %132 {strides = array<i32>} : memref<64x32xf32, #tpu.memory_space<vmem>>, vector<8x32xf32>,
    %c5_i32_79 = arith.constant 5 : i32
    %c8_i32_80 = arith.constant 8 : i32
    %135 = arith.muli %c5_i32_79, %c8_i32_80 : i32
    %136 = tpu.assume_multiple %135, 8 : i32
    %137 = arith.index_cast %136 : i32 to index
    %c0_81 = arith.constant 0 : index
    %138 = vector.load %arg10[%137, %c0_81] : memref<64x32xf32, #tpu.memory_space<vmem>>, vector<8x32xf32>
    %cst_82 = arith.constant dense<0.000000e+00> : vector<8x32xf32>
    %139 = tpu.matmul %132, %82, %cst_82 {dimension_numbers = #tpu.dot_dimension_numbers<[1], [0], [0], [1], [0, 0, 1, 1], [], []>} : vector<8x32xf32>, vector<32x32xf32>, vector<8x32xf32> -> vector<8x32xf32>
    %140 = arith.addf %138, %139 : vector<8x32xf32>
    %141 = math.tanh %140 : vector<8x32xf32>
    %142 = arith.index_cast %136 : i32 to index
    %c0_83 = arith.constant 0 : index
    %143 = vector.load %arg10[%142, %c0_83] : memref<64x32xf32, #tpu.memory_space<vmem>>, vector<8x32xf32>
    tpu.vector_store %arg10[%142, %c0_83], %141 {strides = array<i32>} : memref<64x32xf32, #tpu.memory_space<vmem>>, vector<8x32xf32>,
    %c6_i32_84 = arith.constant 6 : i32
    %c8_i32_85 = arith.constant 8 : i32
    %144 = arith.muli %c6_i32_84, %c8_i32_85 : i32
    %145 = tpu.assume_multiple %144, 8 : i32
    %146 = arith.index_cast %145 : i32 to index
    %c0_86 = arith.constant 0 : index
    %147 = vector.load %arg10[%146, %c0_86] : memref<64x32xf32, #tpu.memory_space<vmem>>, vector<8x32xf32>
    %cst_87 = arith.constant dense<0.000000e+00> : vector<8x32xf32>
    %148 = tpu.matmul %141, %82, %cst_87 {dimension_numbers = #tpu.dot_dimension_numbers<[1], [0], [0], [1], [0, 0, 1, 1], [], []>} : vector<8x32xf32>, vector<32x32xf32>, vector<8x32xf32> -> vector<8x32xf32>
    %149 = arith.addf %147, %148 : vector<8x32xf32>
    %150 = math.tanh %149 : vector<8x32xf32>
    %151 = arith.index_cast %145 : i32 to index
    %c0_88 = arith.constant 0 : index
    %152 = vector.load %arg10[%151, %c0_88] : memref<64x32xf32, #tpu.memory_space<vmem>>, vector<8x32xf32>
    tpu.vector_store %arg10[%151, %c0_88], %150 {strides = array<i32>} : memref<64x32xf32, #tpu.memory_space<vmem>>, vector<8x32xf32>,
    %c7_i32_89 = arith.constant 7 : i32
    %c8_i32_90 = arith.constant 8 : i32
    %153 = arith.muli %c7_i32_89, %c8_i32_90 : i32
    %154 = tpu.assume_multiple %153, 8 : i32
    %155 = arith.index_cast %154 : i32 to index
    %c0_91 = arith.constant 0 : index
    %156 = vector.load %arg10[%155, %c0_91] : memref<64x32xf32, #tpu.memory_space<vmem>>, vector<8x32xf32>
    %cst_92 = arith.constant dense<0.000000e+00> : vector<8x32xf32>
    %157 = tpu.matmul %150, %82, %cst_92 {dimension_numbers = #tpu.dot_dimension_numbers<[1], [0], [0], [1], [0, 0, 1, 1], [], []>} : vector<8x32xf32>, vector<32x32xf32>, vector<8x32xf32> -> vector<8x32xf32>
    %158 = arith.addf %156, %157 : vector<8x32xf32>
    %159 = math.tanh %158 : vector<8x32xf32>
    %160 = arith.index_cast %154 : i32 to index
    %c0_93 = arith.constant 0 : index
    %161 = vector.load %arg10[%160, %c0_93] : memref<64x32xf32, #tpu.memory_space<vmem>>, vector<8x32xf32>
    tpu.vector_store %arg10[%160, %c0_93], %159 {strides = array<i32>} : memref<64x32xf32, #tpu.memory_space<vmem>>, vector<8x32xf32>,
    %c8_i32_94 = arith.constant 8 : i32
    %c0_95 = arith.constant 0 : index
    %c0_96 = arith.constant 0 : index
    %162 = vector.load %arg7[%c0_95, %c0_96] : memref<32x128xf32, #tpu.memory_space<vmem>>, vector<32x128xf32>
    %c0_97 = arith.constant 0 : index
    %c0_98 = arith.constant 0 : index
    %163 = vector.load %arg8[%c0_97, %c0_98] : memref<1x128xf32, #tpu.memory_space<vmem>>, vector<1x128xf32>
    %c0_99 = arith.constant 0 : index
    %c0_100 = arith.constant 0 : index
    %164 = vector.load %arg10[%c0_99, %c0_100] : memref<64x32xf32, #tpu.memory_space<vmem>>, vector<64x32xf32>
    %cst_101 = arith.constant dense<0.000000e+00> : vector<64x128xf32>
    %165 = tpu.matmul %164, %162, %cst_101 {dimension_numbers = #tpu.dot_dimension_numbers<[1], [0], [0], [1], [0, 0, 1, 1], [], []>} : vector<64x32xf32>, vector<32x128xf32>, vector<64x128xf32> -> vector<64x128xf32>
    %166 = vector.broadcast %163 : vector<1x128xf32> to vector<64x128xf32>
    %167 = arith.addf %165, %166 : vector<64x128xf32>
    %c0_102 = arith.constant 0 : index
    %c0_103 = arith.constant 0 : index
    %168 = vector.load %arg9[%c0_102, %c0_103] : memref<64x128xf32, #tpu.memory_space<vmem>>, vector<64x128xf32>
    tpu.vector_store %arg9[%c0_102, %c0_103], %167 {strides = array<i32>} : memref<64x128xf32, #tpu.memory_space<vmem>>, vector<64x128xf32>,
    return
  }
}

</mosaic_0001>

<llo_original>
// kernel: my_model_forward.1
$region0: #{my_model_forward.1}
  #allocation0 [shape = 'u32[]', space=smem, size = 0x4, offset = 0x4, fixed_abs, tag = 'smem constant byte address 0x4 - core index']
  #allocation1 [shape = 'u32[144,128]{1,0:T(1,128)}', space=vmem, size = 0x12000, scoped, tag = 'internal scratch']
  #allocation2 [shape = 'f32[64,32]{1,0:T(8,128)}', space=vmem, size = 0x8000, scoped, tag = 'scratch operand']
  %s0 = inlined_call_operand.vmem [shape: f32[64,4], index: 0, kind: input, shape index: {}]
  %s1 = inlined_call_operand.vmem [shape: f32[4,32], index: 1, kind: input, shape index: {}]
  %s2 = inlined_call_operand.vmem [shape: f32[32,32], index: 2, kind: input, shape index: {}]
  %s3 = inlined_call_operand.vmem [shape: f32[1,32], index: 3, kind: input, shape index: {}]
  %s4 = inlined_call_operand.vmem [shape: f32[32,32], index: 4, kind: input, shape index: {}]
  %s5 = inlined_call_operand.vmem [shape: f32[32,32], index: 5, kind: input, shape index: {}]
  %s6 = inlined_call_operand.vmem [shape: f32[1,32], index: 6, kind: input, shape index: {}]
  %s7 = inlined_call_operand.vmem [shape: f32[32,128], index: 7, kind: input, shape index: {}]
  %s8 = inlined_call_operand.vmem [shape: f32[1,128], index: 8, kind: input, shape index: {}]
  %s9 = inlined_call_operand.vmem [shape: f32[64,128], index: 9, kind: output, shape index: {}]
  %s10 = sld [smem:[#allocation0]]
  $region46: #{my_model_forward.1} parent=0
    _
  %s12 = ssub.s32 1, %s10
  %s13 = scalar_select 0, %s12, %s10
  // Predicated region
  $region2: #{my_model_forward.1} parent=0 // pred_check
    _
  $region3: #{my_model_forward.1} parent=0 // pred_check_branch
    %15 = sbr.rel (0) target = $region5
  $region4: #{my_model_forward.1} parent=0 // pred_region
    _
  $region5: #{my_model_forward.1} parent=0 // pred_fallthru
    _
  // Predicated region
  $region6: #{my_model_forward.1} parent=0 // pred_check
    _
  $region7: #{my_model_forward.1} parent=0 // pred_check_branch
    %17 = sbr.rel (0) target = $region9
  $region8: #{my_model_forward.1} parent=0 // pred_region
    _
  $region9: #{my_model_forward.1} parent=0 // pred_fallthru
    _
  // Predicated region
  $region10: #{my_model_forward.1} parent=0 // pred_check
    _
  $region11: #{my_model_forward.1} parent=0 // pred_check_branch
    %19 = sbr.rel (0) target = $region13
  $region12: #{my_model_forward.1} parent=0 // pred_region
    _
  $region13: #{my_model_forward.1} parent=0 // pred_fallthru
    _
  // Predicated region
  $region14: #{my_model_forward.1} parent=0 // pred_check
    _
  $region15: #{my_model_forward.1} parent=0 // pred_check_branch
    %21 = sbr.rel (0) target = $region17
  $region16: #{my_model_forward.1} parent=0 // pred_region
    _
  $region17: #{my_model_forward.1} parent=0 // pred_fallthru
    _
  // Predicated region
  $region18: #{my_model_forward.1} parent=0 // pred_check
    _
  $region19: #{my_model_forward.1} parent=0 // pred_check_branch
    %23 = sbr.rel (0) target = $region21
  $region20: #{my_model_forward.1} parent=0 // pred_region
    _
  $region21: #{my_model_forward.1} parent=0 // pred_fallthru
    _
  // Predicated region
  $region22: #{my_model_forward.1} parent=0 // pred_check
    _
  $region23: #{my_model_forward.1} parent=0 // pred_check_branch
    %25 = sbr.rel (0) target = $region25
  $region24: #{my_model_forward.1} parent=0 // pred_region
    _
  $region25: #{my_model_forward.1} parent=0 // pred_fallthru
    _
  // Predicated region
  $region26: #{my_model_forward.1} parent=0 // pred_check
    _
  $region27: #{my_model_forward.1} parent=0 // pred_check_branch
    %27 = sbr.rel (0) target = $region29
  $region28: #{my_model_forward.1} parent=0 // pred_region
    _
  $region29: #{my_model_forward.1} parent=0 // pred_fallthru
    _
  // Predicated region
  $region30: #{my_model_forward.1} parent=0 // pred_check
    _
  $region31: #{my_model_forward.1} parent=0 // pred_check_branch
    %29 = sbr.rel (0) target = $region33
  $region32: #{my_model_forward.1} parent=0 // pred_region
    _
  $region33: #{my_model_forward.1} parent=0 // pred_fallthru
    _
  // Predicated region
  $region34: #{my_model_forward.1} parent=0 // pred_check
    _
  $region35: #{my_model_forward.1} parent=0 // pred_check_branch
    %31 = sbr.rel (0) target = $region37
  $region36: #{my_model_forward.1} parent=0 // pred_region
    _
  $region37: #{my_model_forward.1} parent=0 // pred_fallthru
    _
  %v32 = vld [vmem:[%s1] sm:$0xf]
  %v33 = vld [vmem:[%s2] sm:$0xff]
  %v34 = vld [vmem:[%s2 + $0x8] sm:$0xff]
  %v35 = vld [vmem:[%s2 + $0x10] sm:$0xff]
  %v36 = vld [vmem:[%s2 + $0x18] sm:$0xff]
  %v37 = vld [vmem:[%s3] sm:$0x1]
  %v38 = vld [vmem:[%s0] sm:$0xff]
  %v39 = vld [vmem:[%s0 + $0x8] sm:$0xff]
  %v40 = vld [vmem:[%s0 + $0x10] sm:$0xff]
  %v41 = vld [vmem:[%s0 + $0x18] sm:$0xff]
  %v42 = vld [vmem:[%s0 + $0x20] sm:$0xff]
  %v43 = vld [vmem:[%s0 + $0x28] sm:$0xff]
  %v44 = vld [vmem:[%s0 + $0x30] sm:$0xff]
  %v45 = vld [vmem:[%s0 + $0x38] sm:$0xff]
  %v47 = vlaneseq
  %v48 = vshrl.u32 %v47, 7
  %v49 = vsub.s32 0, %v48
  %v50 = vrot.slane %v37, %v49
  %vm52 = vcmask 31744
  %v54 = vsel %vm52, %v38, 0
  %v57 = vsel %vm52, %v39, 0
  %v60 = vsel %vm52, %v40, 0
  %v63 = vsel %vm52, %v41, 0
  %v66 = vsel %vm52, %v42, 0
  %v69 = vsel %vm52, %v43, 0
  %v72 = vsel %vm52, %v44, 0
  %v75 = vsel %vm52, %v45, 0
  %vm77 = vcmask 1043456
  %v79 = vsel %vm77, %v32, 0
  %81 = vmatprep.subr.mxu0 0.0
  %82 = vmatpush1.msra.mxu0 0.0
  %83 = vmatprep.subr.mxu0 0.0
  %84 = vmatpush1.msra.mxu0 0.0
  %85 = vmatprep.subr.mxu0 0.0
  %86 = vmatpush1.msra.mxu0 0.0
  %87 = vmatprep.subr.mxu0 0.0
  %88 = vmatpush1.msra.mxu0 0.0
  %89 = vmatprep.subr.mxu0 0.0
  %90 = vmatpush1.msra.mxu0 0.0
  %91 = vmatprep.subr.mxu0 0.0
  %92 = vmatpush1.msra.mxu0 0.0
  %93 = vmatprep.subr.mxu0 0.0
  %94 = vmatpush1.msra.mxu0 0.0
  %95 = vmatprep.subr.mxu0 0.0
  %96 = vmatpush1.msra.mxu0 0.0
  %97 = vmatprep.subr.mxu0 0.0
  %98 = vmatpush1.msra.mxu0 0.0
  %99 = vmatprep.subr.mxu0 0.0
  %100 = vmatpush1.msra.mxu0 0.0
  %101 = vmatprep.subr.mxu0 0.0
  %102 = vmatpush1.msra.mxu0 0.0
  %103 = vmatprep.subr.mxu0 0.0
  %104 = vmatpush1.msra.mxu0 0.0
  %105 = vmatprep.subr.mxu0 0.0
  %106 = vmatpush1.msra.mxu0 0.0
  %107 = vmatprep.subr.mxu0 0.0
  %108 = vmatpush1.msra.mxu0 0.0
  %109 = vmatprep.subr.mxu0 0.0
  %110 = vmatpush1.msra.mxu0 0.0
  %111 = vmatprep.subr.mxu0 0.0
  %112 = vmatpush1.msra.mxu0 %v79
  %113 = vmatprep.subr.mxu0 0.0
  %114 = vmatpush2.msra.mxu0 0.0
  %115 = vmatprep.subr.mxu0 0.0
  %116 = vmatpush2.msra.mxu0 0.0
  %117 = vmatprep.subr.mxu0 0.0
  %118 = vmatpush2.msra.mxu0 0.0
  %119 = vmatprep.subr.mxu0 0.0
  %120 = vmatpush2.msra.mxu0 0.0
  %121 = vmatprep.subr.mxu0 0.0
  %122 = vmatpush2.msra.mxu0 0.0
  %123 = vmatprep.subr.mxu0 0.0
  %124 = vmatpush2.msra.mxu0 0.0
  %125 = vmatprep.subr.mxu0 0.0
  %126 = vmatpush2.msra.mxu0 0.0
  %127 = vmatprep.subr.mxu0 0.0
  %128 = vmatpush2.msra.mxu0 0.0
  %129 = vmatprep.subr.mxu0 0.0
  %130 = vmatpush2.msra.mxu0 0.0
  %131 = vmatprep.subr.mxu0 0.0
  %132 = vmatpush2.msra.mxu0 0.0
  %133 = vmatprep.subr.mxu0 0.0
  %134 = vmatpush2.msra.mxu0 0.0
  %135 = vmatprep.subr.mxu0 0.0
  %136 = vmatpush2.msra.mxu0 0.0
  %137 = vmatprep.subr.mxu0 0.0
  %138 = vmatpush2.msra.mxu0 0.0
  %139 = vmatprep.subr.mxu0 0.0
  %140 = vmatpush2.msra.mxu0 0.0
  %141 = vmatprep.subr.mxu0 0.0
  %142 = vmatpush2.msra.mxu0 0.0
  %143 = vmatprep.subr.mxu0 0.0
  %144 = vmatpush2.msra.mxu0 0.0
  %145 = vmatprep.mubr.f32.mxu0 0.0
  %146 = vmatmul.mubr.f32.gmra.mxu0 %v54
  %v147 = vpop.f32.mrf.mxu0
  %v148 = vadd.f32 %v50, %v147
  %v149 = vpop.f32.mrf.mxu0
  %150 = vmatprep.mubr.f32.mxu0 0.0
  %151 = vmatmul.mubr.f32.gmra.mxu0 %v57
  %v152 = vpop.f32.mrf.mxu0
  %v153 = vadd.f32 %v50, %v152
  %v154 = vpop.f32.mrf.mxu0
  %155 = vmatprep.mubr.f32.mxu0 0.0
  %156 = vmatmul.mubr.f32.gmra.mxu0 %v60
  %v157 = vpop.f32.mrf.mxu0
  %v158 = vadd.f32 %v50, %v157
  %v159 = vpop.f32.mrf.mxu0
  %160 = vmatprep.mubr.f32.mxu0 0.0
  %161 = vmatmul.mubr.f32.gmra.mxu0 %v63
  %v162 = vpop.f32.mrf.mxu0
  %v163 = vadd.f32 %v50, %v162
  %v164 = vpop.f32.mrf.mxu0
  %165 = vmatprep.mubr.f32.mxu0 0.0
  %166 = vmatmul.mubr.f32.gmra.mxu0 %v66
  %v167 = vpop.f32.mrf.mxu0
  %v168 = vadd.f32 %v50, %v167
  %v169 = vpop.f32.mrf.mxu0
  %170 = vmatprep.mubr.f32.mxu0 0.0
  %171 = vmatmul.mubr.f32.gmra.mxu0 %v69
  %v172 = vpop.f32.mrf.mxu0
  %v173 = vadd.f32 %v50, %v172
  %v174 = vpop.f32.mrf.mxu0
  %175 = vmatprep.mubr.f32.mxu0 0.0
  %176 = vmatmul.mubr.f32.gmra.mxu0 %v72
  %v177 = vpop.f32.mrf.mxu0
  %v178 = vadd.f32 %v50, %v177
  %v179 = vpop.f32.mrf.mxu0
  %180 = vmatprep.mubr.f32.mxu0 0.0
  %181 = vmatmul.mubr.f32.gmra.mxu0 %v75
  %v182 = vpop.f32.mrf.mxu0
  %v183 = vadd.f32 %v50, %v182
  %v184 = vpop.f32.mrf.mxu0
  %185 = vdwg.mxu0
  %vm186 = vcmask 261120
  %187 = vst.msk [vmem:[#allocation2] sm:$0xff] %vm186, %v148
  %188 = vst.msk [vmem:[#allocation2 + $0x8] sm:$0xff] %vm186, %v153
  %189 = vst.msk [vmem:[#allocation2 + $0x10] sm:$0xff] %vm186, %v158
  %190 = vst.msk [vmem:[#allocation2 + $0x18] sm:$0xff] %vm186, %v163
  %191 = vst.msk [vmem:[#allocation2 + $0x20] sm:$0xff] %vm186, %v168
  %192 = vst.msk [vmem:[#allocation2 + $0x28] sm:$0xff] %vm186, %v173
  %193 = vst.msk [vmem:[#allocation2 + $0x30] sm:$0xff] %vm186, %v178
  %194 = vst.msk [vmem:[#allocation2 + $0x38] sm:$0xff] %vm186, %v183
  %v195 = vld [vmem:[#allocation2] sm:$0xff]
  %v197 = vsel %vm186, 0.0, 0
  %199 = vmatprep.subr.mxu0 0.0
  %200 = vmatpush1.msra.mxu0 0.0
  %201 = vmatprep.subr.mxu0 0.0
  %202 = vmatpush1.msra.mxu0 0.0
  %203 = vmatprep.subr.mxu0 0.0
  %204 = vmatpush1.msra.mxu0 0.0
  %205 = vmatprep.subr.mxu0 0.0
  %206 = vmatpush1.msra.mxu0 0.0
  %207 = vmatprep.subr.mxu0 0.0
  %208 = vmatpush1.msra.mxu0 0.0
  %209 = vmatprep.subr.mxu0 0.0
  %210 = vmatpush1.msra.mxu0 0.0
  %211 = vmatprep.subr.mxu0 0.0
  %212 = vmatpush1.msra.mxu0 0.0
  %213 = vmatprep.subr.mxu0 0.0
  %214 = vmatpush1.msra.mxu0 0.0
  %215 = vmatprep.subr.mxu0 0.0
  %216 = vmatpush1.msra.mxu0 0.0
  %217 = vmatprep.subr.mxu0 0.0
  %218 = vmatpush1.msra.mxu0 0.0
  %219 = vmatprep.subr.mxu0 0.0
  %220 = vmatpush1.msra.mxu0 0.0
  %221 = vmatprep.subr.mxu0 0.0
  %222 = vmatpush1.msra.mxu0 0.0
  %223 = vmatprep.subr.mxu0 0.0
  %224 = vmatpush1.msra.mxu0 %v36
  %225 = vmatprep.subr.mxu0 0.0
  %226 = vmatpush1.msra.mxu0 %v35
  %227 = vmatprep.subr.mxu0 0.0
  %228 = vmatpush1.msra.mxu0 %v34
  %229 = vmatprep.subr.mxu0 0.0
  %230 = vmatpush1.msra.mxu0 %v33
  %231 = vmatprep.subr.mxu0 0.0
  %232 = vmatpush2.msra.mxu0 0.0
  %233 = vmatprep.subr.mxu0 0.0
  %234 = vmatpush2.msra.mxu0 0.0
  %235 = vmatprep.subr.mxu0 0.0
  %236 = vmatpush2.msra.mxu0 0.0
  %237 = vmatprep.subr.mxu0 0.0
  %238 = vmatpush2.msra.mxu0 0.0
  %239 = vmatprep.subr.mxu0 0.0
  %240 = vmatpush2.msra.mxu0 0.0
  %241 = vmatprep.subr.mxu0 0.0
  %242 = vmatpush2.msra.mxu0 0.0
  %243 = vmatprep.subr.mxu0 0.0
  %244 = vmatpush2.msra.mxu0 0.0
  %245 = vmatprep.subr.mxu0 0.0
  %246 = vmatpush2.msra.mxu0 0.0
  %247 = vmatprep.subr.mxu0 0.0
  %248 = vmatpush2.msra.mxu0 0.0
  %249 = vmatprep.subr.mxu0 0.0
  %250 = vmatpush2.msra.mxu0 0.0
  %251 = vmatprep.subr.mxu0 0.0
  %252 = vmatpush2.msra.mxu0 0.0
  %253 = vmatprep.subr.mxu0 0.0
  %254 = vmatpush2.msra.mxu0 0.0
  %255 = vmatprep.subr.mxu0 0.0
  %256 = vmatpush2.msra.mxu0 0.0
  %257 = vmatprep.subr.mxu0 0.0
  %258 = vmatpush2.msra.mxu0 0.0
  %259 = vmatprep.subr.mxu0 0.0
  %260 = vmatpush2.msra.mxu0 0.0
  %261 = vmatprep.subr.mxu0 0.0
  %262 = vmatpush2.msra.mxu0 0.0
  %263 = vmatprep.mubr.f32.mxu0 0.0
  %264 = vmatmul.mubr.f32.gmra.mxu0 %v197
  %v265 = vpop.f32.mrf.mxu0
  %v266 = vadd.f32 0.0, %v265
  %v267 = vpop.f32.mrf.mxu0
  %268 = vdwg.mxu0
  %v269 = vadd.f32 %v195, %v266
  %v270 = vtanh.pop %v269
  %271 = vst.msk [vmem:[#allocation2] sm:$0xff] %vm186, %v270
  %s272 = scalar_lea.vmem [#allocation2], 8
  %v273 = vld [vmem:[%s272] sm:$0xff]
  %v275 = vsel %vm186, %v270, 0
  %277 = vmatprep.subr.mxu0 0.0
  %278 = vmatpush1.msra.mxu0 0.0
  %279 = vmatprep.subr.mxu0 0.0
  %280 = vmatpush1.msra.mxu0 0.0
  %281 = vmatprep.subr.mxu0 0.0
  %282 = vmatpush1.msra.mxu0 0.0
  %283 = vmatprep.subr.mxu0 0.0
  %284 = vmatpush1.msra.mxu0 0.0
  %285 = vmatprep.subr.mxu0 0.0
  %286 = vmatpush1.msra.mxu0 0.0
  %287 = vmatprep.subr.mxu0 0.0
  %288 = vmatpush1.msra.mxu0 0.0
  %289 = vmatprep.subr.mxu0 0.0
  %290 = vmatpush1.msra.mxu0 0.0
  %291 = vmatprep.subr.mxu0 0.0
  %292 = vmatpush1.msra.mxu0 0.0
  %293 = vmatprep.subr.mxu0 0.0
  %294 = vmatpush1.msra.mxu0 0.0
  %295 = vmatprep.subr.mxu0 0.0
  %296 = vmatpush1.msra.mxu0 0.0
  %297 = vmatprep.subr.mxu0 0.0
  %298 = vmatpush1.msra.mxu0 0.0
  %299 = vmatprep.subr.mxu0 0.0
  %300 = vmatpush1.msra.mxu0 0.0
  %301 = vmatprep.subr.mxu0 0.0
  %302 = vmatpush1.msra.mxu0 %v36
  %303 = vmatprep.subr.mxu0 0.0
  %304 = vmatpush1.msra.mxu0 %v35
  %305 = vmatprep.subr.mxu0 0.0
  %306 = vmatpush1.msra.mxu0 %v34
  %307 = vmatprep.subr.mxu0 0.0
  %308 = vmatpush1.msra.mxu0 %v33
  %309 = vmatprep.subr.mxu0 0.0
  %310 = vmatpush2.msra.mxu0 0.0
  %311 = vmatprep.subr.mxu0 0.0
  %312 = vmatpush2.msra.mxu0 0.0
  %313 = vmatprep.subr.mxu0 0.0
  %314 = vmatpush2.msra.mxu0 0.0
  %315 = vmatprep.subr.mxu0 0.0
  %316 = vmatpush2.msra.mxu0 0.0
  %317 = vmatprep.subr.mxu0 0.0
  %318 = vmatpush2.msra.mxu0 0.0
  %319 = vmatprep.subr.mxu0 0.0
  %320 = vmatpush2.msra.mxu0 0.0
  %321 = vmatprep.subr.mxu0 0.0
  %322 = vmatpush2.msra.mxu0 0.0
  %323 = vmatprep.subr.mxu0 0.0
  %324 = vmatpush2.msra.mxu0 0.0
  %325 = vmatprep.subr.mxu0 0.0
  %326 = vmatpush2.msra.mxu0 0.0
  %327 = vmatprep.subr.mxu0 0.0
  %328 = vmatpush2.msra.mxu0 0.0
  %329 = vmatprep.subr.mxu0 0.0
  %330 = vmatpush2.msra.mxu0 0.0
  %331 = vmatprep.subr.mxu0 0.0
  %332 = vmatpush2.msra.mxu0 0.0
  %333 = vmatprep.subr.mxu0 0.0
  %334 = vmatpush2.msra.mxu0 0.0
  %335 = vmatprep.subr.mxu0 0.0
  %336 = vmatpush2.msra.mxu0 0.0
  %337 = vmatprep.subr.mxu0 0.0
  %338 = vmatpush2.msra.mxu0 0.0
  %339 = vmatprep.subr.mxu0 0.0
  %340 = vmatpush2.msra.mxu0 0.0
  %341 = vmatprep.mubr.f32.mxu0 0.0
  %342 = vmatmul.mubr.f32.gmra.mxu0 %v275
  %v343 = vpop.f32.mrf.mxu0
  %v344 = vadd.f32 0.0, %v343
  %v345 = vpop.f32.mrf.mxu0
  %346 = vdwg.mxu0
  %v347 = vadd.f32 %v273, %v344
  %v348 = vtanh.pop %v347
  %349 = vst.msk [vmem:[%s272] sm:$0xff] %vm186, %v348
  %s350 = scalar_lea.vmem [#allocation2], 16
  %v351 = vld [vmem:[%s350] sm:$0xff]
  %v353 = vsel %vm186, %v348, 0
  %355 = vmatprep.subr.mxu0 0.0
  %356 = vmatpush1.msra.mxu0 0.0
  %357 = vmatprep.subr.mxu0 0.0
  %358 = vmatpush1.msra.mxu0 0.0
  %359 = vmatprep.subr.mxu0 0.0
  %360 = vmatpush1.msra.mxu0 0.0
  %361 = vmatprep.subr.mxu0 0.0
  %362 = vmatpush1.msra.mxu0 0.0
  %363 = vmatprep.subr.mxu0 0.0
  %364 = vmatpush1.msra.mxu0 0.0
  %365 = vmatprep.subr.mxu0 0.0
  %366 = vmatpush1.msra.mxu0 0.0
  %367 = vmatprep.subr.mxu0 0.0
  %368 = vmatpush1.msra.mxu0 0.0
  %369 = vmatprep.subr.mxu0 0.0
  %370 = vmatpush1.msra.mxu0 0.0
  %371 = vmatprep.subr.mxu0 0.0
  %372 = vmatpush1.msra.mxu0 0.0
  %373 = vmatprep.subr.mxu0 0.0
  %374 = vmatpush1.msra.mxu0 0.0
  %375 = vmatprep.subr.mxu0 0.0
  %376 = vmatpush1.msra.mxu0 0.0
  %377 = vmatprep.subr.mxu0 0.0
  %378 = vmatpush1.msra.mxu0 0.0
  %379 = vmatprep.subr.mxu0 0.0
  %380 = vmatpush1.msra.mxu0 %v36
  %381 = vmatprep.subr.mxu0 0.0
  %382 = vmatpush1.msra.mxu0 %v35
  %383 = vmatprep.subr.mxu0 0.0
  %384 = vmatpush1.msra.mxu0 %v34
  %385 = vmatprep.subr.mxu0 0.0
  %386 = vmatpush1.msra.mxu0 %v33
  %387 = vmatprep.subr.mxu0 0.0
  %388 = vmatpush2.msra.mxu0 0.0
  %389 = vmatprep.subr.mxu0 0.0
  %390 = vmatpush2.msra.mxu0 0.0
  %391 = vmatprep.subr.mxu0 0.0
  %392 = vmatpush2.msra.mxu0 0.0
  %393 = vmatprep.subr.mxu0 0.0
  %394 = vmatpush2.msra.mxu0 0.0
  %395 = vmatprep.subr.mxu0 0.0
  %396 = vmatpush2.msra.mxu0 0.0
  %397 = vmatprep.subr.mxu0 0.0
  %398 = vmatpush2.msra.mxu0 0.0
  %399 = vmatprep.subr.mxu0 0.0
  %400 = vmatpush2.msra.mxu0 0.0
  %401 = vmatprep.subr.mxu0 0.0
  %402 = vmatpush2.msra.mxu0 0.0
  %403 = vmatprep.subr.mxu0 0.0
  %404 = vmatpush2.msra.mxu0 0.0
  %405 = vmatprep.subr.mxu0 0.0
  %406 = vmatpush2.msra.mxu0 0.0
  %407 = vmatprep.subr.mxu0 0.0
  %408 = vmatpush2.msra.mxu0 0.0
  %409 = vmatprep.subr.mxu0 0.0
  %410 = vmatpush2.msra.mxu0 0.0
  %411 = vmatprep.subr.mxu0 0.0
  %412 = vmatpush2.msra.mxu0 0.0
  %413 = vmatprep.subr.mxu0 0.0
  %414 = vmatpush2.msra.mxu0 0.0
  %415 = vmatprep.subr.mxu0 0.0
  %416 = vmatpush2.msra.mxu0 0.0
  %417 = vmatprep.subr.mxu0 0.0
  %418 = vmatpush2.msra.mxu0 0.0
  %419 = vmatprep.mubr.f32.mxu0 0.0
  %420 = vmatmul.mubr.f32.gmra.mxu0 %v353
  %v421 = vpop.f32.mrf.mxu0
  %v422 = vadd.f32 0.0, %v421
  %v423 = vpop.f32.mrf.mxu0
  %424 = vdwg.mxu0
  %v425 = vadd.f32 %v351, %v422
  %v426 = vtanh.pop %v425
  %427 = vst.msk [vmem:[%s350] sm:$0xff] %vm186, %v426
  %s428 = scalar_lea.vmem [#allocation2], 24
  %v429 = vld [vmem:[%s428] sm:$0xff]
  %v431 = vsel %vm186, %v426, 0
  %433 = vmatprep.subr.mxu0 0.0
  %434 = vmatpush1.msra.mxu0 0.0
  %435 = vmatprep.subr.mxu0 0.0
  %436 = vmatpush1.msra.mxu0 0.0
  %437 = vmatprep.subr.mxu0 0.0
  %438 = vmatpush1.msra.mxu0 0.0
  %439 = vmatprep.subr.mxu0 0.0
  %440 = vmatpush1.msra.mxu0 0.0
  %441 = vmatprep.subr.mxu0 0.0
  %442 = vmatpush1.msra.mxu0 0.0
  %443 = vmatprep.subr.mxu0 0.0
  %444 = vmatpush1.msra.mxu0 0.0
  %445 = vmatprep.subr.mxu0 0.0
  %446 = vmatpush1.msra.mxu0 0.0
  %447 = vmatprep.subr.mxu0 0.0
  %448 = vmatpush1.msra.mxu0 0.0
  %449 = vmatprep.subr.mxu0 0.0
  %450 = vmatpush1.msra.mxu0 0.0
  %451 = vmatprep.subr.mxu0 0.0
  %452 = vmatpush1.msra.mxu0 0.0
  %453 = vmatprep.subr.mxu0 0.0
  %454 = vmatpush1.msra.mxu0 0.0
  %455 = vmatprep.subr.mxu0 0.0
  %456 = vmatpush1.msra.mxu0 0.0
  %457 = vmatprep.subr.mxu0 0.0
  %458 = vmatpush1.msra.mxu0 %v36
  %459 = vmatprep.subr.mxu0 0.0
  %460 = vmatpush1.msra.mxu0 %v35
  %461 = vmatprep.subr.mxu0 0.0
  %462 = vmatpush1.msra.mxu0 %v34
  %463 = vmatprep.subr.mxu0 0.0
  %464 = vmatpush1.msra.mxu0 %v33
  %465 = vmatprep.subr.mxu0 0.0
  %466 = vmatpush2.msra.mxu0 0.0
  %467 = vmatprep.subr.mxu0 0.0
  %468 = vmatpush2.msra.mxu0 0.0
  %469 = vmatprep.subr.mxu0 0.0
  %470 = vmatpush2.msra.mxu0 0.0
  %471 = vmatprep.subr.mxu0 0.0
  %472 = vmatpush2.msra.mxu0 0.0
  %473 = vmatprep.subr.mxu0 0.0
  %474 = vmatpush2.msra.mxu0 0.0
  %475 = vmatprep.subr.mxu0 0.0
  %476 = vmatpush2.msra.mxu0 0.0
  %477 = vmatprep.subr.mxu0 0.0
  %478 = vmatpush2.msra.mxu0 0.0
  %479 = vmatprep.subr.mxu0 0.0
  %480 = vmatpush2.msra.mxu0 0.0
  %481 = vmatprep.subr.mxu0 0.0
  %482 = vmatpush2.msra.mxu0 0.0
  %483 = vmatprep.subr.mxu0 0.0
  %484 = vmatpush2.msra.mxu0 0.0
  %485 = vmatprep.subr.mxu0 0.0
  %486 = vmatpush2.msra.mxu0 0.0
  %487 = vmatprep.subr.mxu0 0.0
  %488 = vmatpush2.msra.mxu0 0.0
  %489 = vmatprep.subr.mxu0 0.0
  %490 = vmatpush2.msra.mxu0 0.0
  %491 = vmatprep.subr.mxu0 0.0
  %492 = vmatpush2.msra.mxu0 0.0
  %493 = vmatprep.subr.mxu0 0.0
  %494 = vmatpush2.msra.mxu0 0.0
  %495 = vmatprep.subr.mxu0 0.0
  %496 = vmatpush2.msra.mxu0 0.0
  %497 = vmatprep.mubr.f32.mxu0 0.0
  %498 = vmatmul.mubr.f32.gmra.mxu0 %v431
  %v499 = vpop.f32.mrf.mxu0
  %v500 = vadd.f32 0.0, %v499
  %v501 = vpop.f32.mrf.mxu0
  %502 = vdwg.mxu0
  %v503 = vadd.f32 %v429, %v500
  %v504 = vtanh.pop %v503
  %505 = vst.msk [vmem:[%s428] sm:$0xff] %vm186, %v504
  %s506 = scalar_lea.vmem [#allocation2], 32
  %v507 = vld [vmem:[%s506] sm:$0xff]
  %v509 = vsel %vm186, %v504, 0
  %511 = vmatprep.subr.mxu0 0.0
  %512 = vmatpush1.msra.mxu0 0.0
  %513 = vmatprep.subr.mxu0 0.0
  %514 = vmatpush1.msra.mxu0 0.0
  %515 = vmatprep.subr.mxu0 0.0
  %516 = vmatpush1.msra.mxu0 0.0
  %517 = vmatprep.subr.mxu0 0.0
  %518 = vmatpush1.msra.mxu0 0.0
  %519 = vmatprep.subr.mxu0 0.0
  %520 = vmatpush1.msra.mxu0 0.0
  %521 = vmatprep.subr.mxu0 0.0
  %522 = vmatpush1.msra.mxu0 0.0
  %523 = vmatprep.subr.mxu0 0.0
  %524 = vmatpush1.msra.mxu0 0.0
  %525 = vmatprep.subr.mxu0 0.0
  %526 = vmatpush1.msra.mxu0 0.0
  %527 = vmatprep.subr.mxu0 0.0
  %528 = vmatpush1.msra.mxu0 0.0
  %529 = vmatprep.subr.mxu0 0.0
  %530 = vmatpush1.msra.mxu0 0.0
  %531 = vmatprep.subr.mxu0 0.0
  %532 = vmatpush1.msra.mxu0 0.0
  %533 = vmatprep.subr.mxu0 0.0
  %534 = vmatpush1.msra.mxu0 0.0
  %535 = vmatprep.subr.mxu0 0.0
  %536 = vmatpush1.msra.mxu0 %v36
  %537 = vmatprep.subr.mxu0 0.0
  %538 = vmatpush1.msra.mxu0 %v35
  %539 = vmatprep.subr.mxu0 0.0
  %540 = vmatpush1.msra.mxu0 %v34
  %541 = vmatprep.subr.mxu0 0.0
  %542 = vmatpush1.msra.mxu0 %v33
  %543 = vmatprep.subr.mxu0 0.0
  %544 = vmatpush2.msra.mxu0 0.0
  %545 = vmatprep.subr.mxu0 0.0
  %546 = vmatpush2.msra.mxu0 0.0
  %547 = vmatprep.subr.mxu0 0.0
  %548 = vmatpush2.msra.mxu0 0.0
  %549 = vmatprep.subr.mxu0 0.0
  %550 = vmatpush2.msra.mxu0 0.0
  %551 = vmatprep.subr.mxu0 0.0
  %552 = vmatpush2.msra.mxu0 0.0
  %553 = vmatprep.subr.mxu0 0.0
  %554 = vmatpush2.msra.mxu0 0.0
  %555 = vmatprep.subr.mxu0 0.0
  %556 = vmatpush2.msra.mxu0 0.0
  %557 = vmatprep.subr.mxu0 0.0
  %558 = vmatpush2.msra.mxu0 0.0
  %559 = vmatprep.subr.mxu0 0.0
  %560 = vmatpush2.msra.mxu0 0.0
  %561 = vmatprep.subr.mxu0 0.0
  %562 = vmatpush2.msra.mxu0 0.0
  %563 = vmatprep.subr.mxu0 0.0
  %564 = vmatpush2.msra.mxu0 0.0
  %565 = vmatprep.subr.mxu0 0.0
  %566 = vmatpush2.msra.mxu0 0.0
  %567 = vmatprep.subr.mxu0 0.0
  %568 = vmatpush2.msra.mxu0 0.0
  %569 = vmatprep.subr.mxu0 0.0
  %570 = vmatpush2.msra.mxu0 0.0
  %571 = vmatprep.subr.mxu0 0.0
  %572 = vmatpush2.msra.mxu0 0.0
  %573 = vmatprep.subr.mxu0 0.0
  %574 = vmatpush2.msra.mxu0 0.0
  %575 = vmatprep.mubr.f32.mxu0 0.0
  %576 = vmatmul.mubr.f32.gmra.mxu0 %v509
  %v577 = vpop.f32.mrf.mxu0
  %v578 = vadd.f32 0.0, %v577
  %v579 = vpop.f32.mrf.mxu0
  %580 = vdwg.mxu0
  %v581 = vadd.f32 %v507, %v578
  %v582 = vtanh.pop %v581
  %583 = vst.msk [vmem:[%s506] sm:$0xff] %vm186, %v582
  %s584 = scalar_lea.vmem [#allocation2], 40
  %v585 = vld [vmem:[%s584] sm:$0xff]
  %v587 = vsel %vm186, %v582, 0
  %589 = vmatprep.subr.mxu0 0.0
  %590 = vmatpush1.msra.mxu0 0.0
  %591 = vmatprep.subr.mxu0 0.0
  %592 = vmatpush1.msra.mxu0 0.0
  %593 = vmatprep.subr.mxu0 0.0
  %594 = vmatpush1.msra.mxu0 0.0
  %595 = vmatprep.subr.mxu0 0.0
  %596 = vmatpush1.msra.mxu0 0.0
  %597 = vmatprep.subr.mxu0 0.0
  %598 = vmatpush1.msra.mxu0 0.0
  %599 = vmatprep.subr.mxu0 0.0
  %600 = vmatpush1.msra.mxu0 0.0
  %601 = vmatprep.subr.mxu0 0.0
  %602 = vmatpush1.msra.mxu0 0.0
  %603 = vmatprep.subr.mxu0 0.0
  %604 = vmatpush1.msra.mxu0 0.0
  %605 = vmatprep.subr.mxu0 0.0
  %606 = vmatpush1.msra.mxu0 0.0
  %607 = vmatprep.subr.mxu0 0.0
  %608 = vmatpush1.msra.mxu0 0.0
  %609 = vmatprep.subr.mxu0 0.0
  %610 = vmatpush1.msra.mxu0 0.0
  %611 = vmatprep.subr.mxu0 0.0
  %612 = vmatpush1.msra.mxu0 0.0
  %613 = vmatprep.subr.mxu0 0.0
  %614 = vmatpush1.msra.mxu0 %v36
  %615 = vmatprep.subr.mxu0 0.0
  %616 = vmatpush1.msra.mxu0 %v35
  %617 = vmatprep.subr.mxu0 0.0
  %618 = vmatpush1.msra.mxu0 %v34
  %619 = vmatprep.subr.mxu0 0.0
  %620 = vmatpush1.msra.mxu0 %v33
  %621 = vmatprep.subr.mxu0 0.0
  %622 = vmatpush2.msra.mxu0 0.0
  %623 = vmatprep.subr.mxu0 0.0
  %624 = vmatpush2.msra.mxu0 0.0
  %625 = vmatprep.subr.mxu0 0.0
  %626 = vmatpush2.msra.mxu0 0.0
  %627 = vmatprep.subr.mxu0 0.0
  %628 = vmatpush2.msra.mxu0 0.0
  %629 = vmatprep.subr.mxu0 0.0
  %630 = vmatpush2.msra.mxu0 0.0
  %631 = vmatprep.subr.mxu0 0.0
  %632 = vmatpush2.msra.mxu0 0.0
  %633 = vmatprep.subr.mxu0 0.0
  %634 = vmatpush2.msra.mxu0 0.0
  %635 = vmatprep.subr.mxu0 0.0
  %636 = vmatpush2.msra.mxu0 0.0
  %637 = vmatprep.subr.mxu0 0.0
  %638 = vmatpush2.msra.mxu0 0.0
  %639 = vmatprep.subr.mxu0 0.0
  %640 = vmatpush2.msra.mxu0 0.0
  %641 = vmatprep.subr.mxu0 0.0
  %642 = vmatpush2.msra.mxu0 0.0
  %643 = vmatprep.subr.mxu0 0.0
  %644 = vmatpush2.msra.mxu0 0.0
  %645 = vmatprep.subr.mxu0 0.0
  %646 = vmatpush2.msra.mxu0 0.0
  %647 = vmatprep.subr.mxu0 0.0
  %648 = vmatpush2.msra.mxu0 0.0
  %649 = vmatprep.subr.mxu0 0.0
  %650 = vmatpush2.msra.mxu0 0.0
  %651 = vmatprep.subr.mxu0 0.0
  %652 = vmatpush2.msra.mxu0 0.0
  %653 = vmatprep.mubr.f32.mxu0 0.0
  %654 = vmatmul.mubr.f32.gmra.mxu0 %v587
  %v655 = vpop.f32.mrf.mxu0
  %v656 = vadd.f32 0.0, %v655
  %v657 = vpop.f32.mrf.mxu0
  %658 = vdwg.mxu0
  %v659 = vadd.f32 %v585, %v656
  %v660 = vtanh.pop %v659
  %661 = vst.msk [vmem:[%s584] sm:$0xff] %vm186, %v660
  %s662 = scalar_lea.vmem [#allocation2], 48
  %v663 = vld [vmem:[%s662] sm:$0xff]
  %v665 = vsel %vm186, %v660, 0
  %667 = vmatprep.subr.mxu0 0.0
  %668 = vmatpush1.msra.mxu0 0.0
  %669 = vmatprep.subr.mxu0 0.0
  %670 = vmatpush1.msra.mxu0 0.0
  %671 = vmatprep.subr.mxu0 0.0
  %672 = vmatpush1.msra.mxu0 0.0
  %673 = vmatprep.subr.mxu0 0.0
  %674 = vmatpush1.msra.mxu0 0.0
  %675 = vmatprep.subr.mxu0 0.0
  %676 = vmatpush1.msra.mxu0 0.0
  %677 = vmatprep.subr.mxu0 0.0
  %678 = vmatpush1.msra.mxu0 0.0
  %679 = vmatprep.subr.mxu0 0.0
  %680 = vmatpush1.msra.mxu0 0.0
  %681 = vmatprep.subr.mxu0 0.0
  %682 = vmatpush1.msra.mxu0 0.0
  %683 = vmatprep.subr.mxu0 0.0
  %684 = vmatpush1.msra.mxu0 0.0
  %685 = vmatprep.subr.mxu0 0.0
  %686 = vmatpush1.msra.mxu0 0.0
  %687 = vmatprep.subr.mxu0 0.0
  %688 = vmatpush1.msra.mxu0 0.0
  %689 = vmatprep.subr.mxu0 0.0
  %690 = vmatpush1.msra.mxu0 0.0
  %691 = vmatprep.subr.mxu0 0.0
  %692 = vmatpush1.msra.mxu0 %v36
  %693 = vmatprep.subr.mxu0 0.0
  %694 = vmatpush1.msra.mxu0 %v35
  %695 = vmatprep.subr.mxu0 0.0
  %696 = vmatpush1.msra.mxu0 %v34
  %697 = vmatprep.subr.mxu0 0.0
  %698 = vmatpush1.msra.mxu0 %v33
  %699 = vmatprep.subr.mxu0 0.0
  %700 = vmatpush2.msra.mxu0 0.0
  %701 = vmatprep.subr.mxu0 0.0
  %702 = vmatpush2.msra.mxu0 0.0
  %703 = vmatprep.subr.mxu0 0.0
  %704 = vmatpush2.msra.mxu0 0.0
  %705 = vmatprep.subr.mxu0 0.0
  %706 = vmatpush2.msra.mxu0 0.0
  %707 = vmatprep.subr.mxu0 0.0
  %708 = vmatpush2.msra.mxu0 0.0
  %709 = vmatprep.subr.mxu0 0.0
  %710 = vmatpush2.msra.mxu0 0.0
  %711 = vmatprep.subr.mxu0 0.0
  %712 = vmatpush2.msra.mxu0 0.0
  %713 = vmatprep.subr.mxu0 0.0
  %714 = vmatpush2.msra.mxu0 0.0
  %715 = vmatprep.subr.mxu0 0.0
  %716 = vmatpush2.msra.mxu0 0.0
  %717 = vmatprep.subr.mxu0 0.0
  %718 = vmatpush2.msra.mxu0 0.0
  %719 = vmatprep.subr.mxu0 0.0
  %720 = vmatpush2.msra.mxu0 0.0
  %721 = vmatprep.subr.mxu0 0.0
  %722 = vmatpush2.msra.mxu0 0.0
  %723 = vmatprep.subr.mxu0 0.0
  %724 = vmatpush2.msra.mxu0 0.0
  %725 = vmatprep.subr.mxu0 0.0
  %726 = vmatpush2.msra.mxu0 0.0
  %727 = vmatprep.subr.mxu0 0.0
  %728 = vmatpush2.msra.mxu0 0.0
  %729 = vmatprep.subr.mxu0 0.0
  %730 = vmatpush2.msra.mxu0 0.0
  %731 = vmatprep.mubr.f32.mxu0 0.0
  %732 = vmatmul.mubr.f32.gmra.mxu0 %v665
  %v733 = vpop.f32.mrf.mxu0
  %v734 = vadd.f32 0.0, %v733
  %v735 = vpop.f32.mrf.mxu0
  %736 = vdwg.mxu0
  %v737 = vadd.f32 %v663, %v734
  %v738 = vtanh.pop %v737
  %739 = vst.msk [vmem:[%s662] sm:$0xff] %vm186, %v738
  %s740 = scalar_lea.vmem [#allocation2], 56
  %v741 = vld [vmem:[%s740] sm:$0xff]
  %v743 = vsel %vm186, %v738, 0
  %745 = vmatprep.subr.mxu0 0.0
  %746 = vmatpush1.msra.mxu0 0.0
  %747 = vmatprep.subr.mxu0 0.0
  %748 = vmatpush1.msra.mxu0 0.0
  %749 = vmatprep.subr.mxu0 0.0
  %750 = vmatpush1.msra.mxu0 0.0
  %751 = vmatprep.subr.mxu0 0.0
  %752 = vmatpush1.msra.mxu0 0.0
  %753 = vmatprep.subr.mxu0 0.0
  %754 = vmatpush1.msra.mxu0 0.0
  %755 = vmatprep.subr.mxu0 0.0
  %756 = vmatpush1.msra.mxu0 0.0
  %757 = vmatprep.subr.mxu0 0.0
  %758 = vmatpush1.msra.mxu0 0.0
  %759 = vmatprep.subr.mxu0 0.0
  %760 = vmatpush1.msra.mxu0 0.0
  %761 = vmatprep.subr.mxu0 0.0
  %762 = vmatpush1.msra.mxu0 0.0
  %763 = vmatprep.subr.mxu0 0.0
  %764 = vmatpush1.msra.mxu0 0.0
  %765 = vmatprep.subr.mxu0 0.0
  %766 = vmatpush1.msra.mxu0 0.0
  %767 = vmatprep.subr.mxu0 0.0
  %768 = vmatpush1.msra.mxu0 0.0
  %769 = vmatprep.subr.mxu0 0.0
  %770 = vmatpush1.msra.mxu0 %v36
  %771 = vmatprep.subr.mxu0 0.0
  %772 = vmatpush1.msra.mxu0 %v35
  %773 = vmatprep.subr.mxu0 0.0
  %774 = vmatpush1.msra.mxu0 %v34
  %775 = vmatprep.subr.mxu0 0.0
  %776 = vmatpush1.msra.mxu0 %v33
  %777 = vmatprep.subr.mxu0 0.0
  %778 = vmatpush2.msra.mxu0 0.0
  %779 = vmatprep.subr.mxu0 0.0
  %780 = vmatpush2.msra.mxu0 0.0
  %781 = vmatprep.subr.mxu0 0.0
  %782 = vmatpush2.msra.mxu0 0.0
  %783 = vmatprep.subr.mxu0 0.0
  %784 = vmatpush2.msra.mxu0 0.0
  %785 = vmatprep.subr.mxu0 0.0
  %786 = vmatpush2.msra.mxu0 0.0
  %787 = vmatprep.subr.mxu0 0.0
  %788 = vmatpush2.msra.mxu0 0.0
  %789 = vmatprep.subr.mxu0 0.0
  %790 = vmatpush2.msra.mxu0 0.0
  %791 = vmatprep.subr.mxu0 0.0
  %792 = vmatpush2.msra.mxu0 0.0
  %793 = vmatprep.subr.mxu0 0.0
  %794 = vmatpush2.msra.mxu0 0.0
  %795 = vmatprep.subr.mxu0 0.0
  %796 = vmatpush2.msra.mxu0 0.0
  %797 = vmatprep.subr.mxu0 0.0
  %798 = vmatpush2.msra.mxu0 0.0
  %799 = vmatprep.subr.mxu0 0.0
  %800 = vmatpush2.msra.mxu0 0.0
  %801 = vmatprep.subr.mxu0 0.0
  %802 = vmatpush2.msra.mxu0 0.0
  %803 = vmatprep.subr.mxu0 0.0
  %804 = vmatpush2.msra.mxu0 0.0
  %805 = vmatprep.subr.mxu0 0.0
  %806 = vmatpush2.msra.mxu0 0.0
  %807 = vmatprep.subr.mxu0 0.0
  %808 = vmatpush2.msra.mxu0 0.0
  %809 = vmatprep.mubr.f32.mxu0 0.0
  %810 = vmatmul.mubr.f32.gmra.mxu0 %v743
  %v811 = vpop.f32.mrf.mxu0
  %v812 = vadd.f32 0.0, %v811
  %v813 = vpop.f32.mrf.mxu0
  %814 = vdwg.mxu0
  %v815 = vadd.f32 %v741, %v812
  %v816 = vtanh.pop %v815
  %817 = vst.msk [vmem:[%s740] sm:$0xff] %vm186, %v816
  %v818 = vld [vmem:[%s4] sm:$0xff]
  %v819 = vld [vmem:[%s4 + $0x8] sm:$0xff]
  %v820 = vld [vmem:[%s4 + $0x10] sm:$0xff]
  %v821 = vld [vmem:[%s4 + $0x18] sm:$0xff]
  %v822 = vld [vmem:[%s5] sm:$0xff]
  %v823 = vld [vmem:[%s5 + $0x8] sm:$0xff]
  %v824 = vld [vmem:[%s5 + $0x10] sm:$0xff]
  %v825 = vld [vmem:[%s5 + $0x18] sm:$0xff]
  %v826 = vld [vmem:[%s6] sm:$0x1]
  %v827 = vld [vmem:[#allocation2] sm:$0xff]
  %v828 = vld [vmem:[#allocation2 + $0x8] sm:$0xff]
  %v829 = vld [vmem:[#allocation2 + $0x10] sm:$0xff]
  %v830 = vld [vmem:[#allocation2 + $0x18] sm:$0xff]
  %v831 = vld [vmem:[#allocation2 + $0x20] sm:$0xff]
  %v832 = vld [vmem:[#allocation2 + $0x28] sm:$0xff]
  %v833 = vld [vmem:[#allocation2 + $0x30] sm:$0xff]
  %v834 = vld [vmem:[#allocation2 + $0x38] sm:$0xff]
  %v836 = vlaneseq
  %v837 = vshrl.u32 %v836, 7
  %v838 = vsub.s32 0, %v837
  %v839 = vrot.slane %v826, %v838
  %v842 = vsel %vm186, %v827, 0
  %v845 = vsel %vm186, %v828, 0
  %v848 = vsel %vm186, %v829, 0
  %v851 = vsel %vm186, %v830, 0
  %v854 = vsel %vm186, %v831, 0
  %v857 = vsel %vm186, %v832, 0
  %v860 = vsel %vm186, %v833, 0
  %v863 = vsel %vm186, %v834, 0
  %865 = vmatprep.subr.mxu0 0.0
  %866 = vmatpush1.msra.mxu0 0.0
  %867 = vmatprep.subr.mxu0 0.0
  %868 = vmatpush1.msra.mxu0 0.0
  %869 = vmatprep.subr.mxu0 0.0
  %870 = vmatpush1.msra.mxu0 0.0
  %871 = vmatprep.subr.mxu0 0.0
  %872 = vmatpush1.msra.mxu0 0.0
  %873 = vmatprep.subr.mxu0 0.0
  %874 = vmatpush1.msra.mxu0 0.0
  %875 = vmatprep.subr.mxu0 0.0
  %876 = vmatpush1.msra.mxu0 0.0
  %877 = vmatprep.subr.mxu0 0.0
  %878 = vmatpush1.msra.mxu0 0.0
  %879 = vmatprep.subr.mxu0 0.0
  %880 = vmatpush1.msra.mxu0 0.0
  %881 = vmatprep.subr.mxu0 0.0
  %882 = vmatpush1.msra.mxu0 0.0
  %883 = vmatprep.subr.mxu0 0.0
  %884 = vmatpush1.msra.mxu0 0.0
  %885 = vmatprep.subr.mxu0 0.0
  %886 = vmatpush1.msra.mxu0 0.0
  %887 = vmatprep.subr.mxu0 0.0
  %888 = vmatpush1.msra.mxu0 0.0
  %889 = vmatprep.subr.mxu0 0.0
  %890 = vmatpush1.msra.mxu0 %v821
  %891 = vmatprep.subr.mxu0 0.0
  %892 = vmatpush1.msra.mxu0 %v820
  %893 = vmatprep.subr.mxu0 0.0
  %894 = vmatpush1.msra.mxu0 %v819
  %895 = vmatprep.subr.mxu0 0.0
  %896 = vmatpush1.msra.mxu0 %v818
  %897 = vmatprep.subr.mxu0 0.0
  %898 = vmatpush2.msra.mxu0 0.0
  %899 = vmatprep.subr.mxu0 0.0
  %900 = vmatpush2.msra.mxu0 0.0
  %901 = vmatprep.subr.mxu0 0.0
  %902 = vmatpush2.msra.mxu0 0.0
  %903 = vmatprep.subr.mxu0 0.0
  %904 = vmatpush2.msra.mxu0 0.0
  %905 = vmatprep.subr.mxu0 0.0
  %906 = vmatpush2.msra.mxu0 0.0
  %907 = vmatprep.subr.mxu0 0.0
  %908 = vmatpush2.msra.mxu0 0.0
  %909 = vmatprep.subr.mxu0 0.0
  %910 = vmatpush2.msra.mxu0 0.0
  %911 = vmatprep.subr.mxu0 0.0
  %912 = vmatpush2.msra.mxu0 0.0
  %913 = vmatprep.subr.mxu0 0.0
  %914 = vmatpush2.msra.mxu0 0.0
  %915 = vmatprep.subr.mxu0 0.0
  %916 = vmatpush2.msra.mxu0 0.0
  %917 = vmatprep.subr.mxu0 0.0
  %918 = vmatpush2.msra.mxu0 0.0
  %919 = vmatprep.subr.mxu0 0.0
  %920 = vmatpush2.msra.mxu0 0.0
  %921 = vmatprep.subr.mxu0 0.0
  %922 = vmatpush2.msra.mxu0 0.0
  %923 = vmatprep.subr.mxu0 0.0
  %924 = vmatpush2.msra.mxu0 0.0
  %925 = vmatprep.subr.mxu0 0.0
  %926 = vmatpush2.msra.mxu0 0.0
  %927 = vmatprep.subr.mxu0 0.0
  %928 = vmatpush2.msra.mxu0 0.0
  %929 = vmatprep.mubr.f32.mxu0 0.0
  %930 = vmatmul.mubr.f32.gmra.mxu0 %v842
  %v931 = vpop.f32.mrf.mxu0
  %v932 = vadd.f32 %v839, %v931
  %v933 = vpop.f32.mrf.mxu0
  %934 = vmatprep.mubr.f32.mxu0 0.0
  %935 = vmatmul.mubr.f32.gmra.mxu0 %v845
  %v936 = vpop.f32.mrf.mxu0
  %v937 = vadd.f32 %v839, %v936
  %v938 = vpop.f32.mrf.mxu0
  %939 = vmatprep.mubr.f32.mxu0 0.0
  %940 = vmatmul.mubr.f32.gmra.mxu0 %v848
  %v941 = vpop.f32.mrf.mxu0
  %v942 = vadd.f32 %v839, %v941
  %v943 = vpop.f32.mrf.mxu0
  %944 = vmatprep.mubr.f32.mxu0 0.0
  %945 = vmatmul.mubr.f32.gmra.mxu0 %v851
  %v946 = vpop.f32.mrf.mxu0
  %v947 = vadd.f32 %v839, %v946
  %v948 = vpop.f32.mrf.mxu0
  %949 = vmatprep.mubr.f32.mxu0 0.0
  %950 = vmatmul.mubr.f32.gmra.mxu0 %v854
  %v951 = vpop.f32.mrf.mxu0
  %v952 = vadd.f32 %v839, %v951
  %v953 = vpop.f32.mrf.mxu0
  %954 = vmatprep.mubr.f32.mxu0 0.0
  %955 = vmatmul.mubr.f32.gmra.mxu0 %v857
  %v956 = vpop.f32.mrf.mxu0
  %v957 = vadd.f32 %v839, %v956
  %v958 = vpop.f32.mrf.mxu0
  %959 = vmatprep.mubr.f32.mxu0 0.0
  %960 = vmatmul.mubr.f32.gmra.mxu0 %v860
  %v961 = vpop.f32.mrf.mxu0
  %v962 = vadd.f32 %v839, %v961
  %v963 = vpop.f32.mrf.mxu0
  %964 = vmatprep.mubr.f32.mxu0 0.0
  %965 = vmatmul.mubr.f32.gmra.mxu0 %v863
  %v966 = vpop.f32.mrf.mxu0
  %v967 = vadd.f32 %v839, %v966
  %v968 = vpop.f32.mrf.mxu0
  %969 = vdwg.mxu0
  %970 = vst.msk [vmem:[#allocation2] sm:$0xff] %vm186, %v932
  %971 = vst.msk [vmem:[#allocation2 + $0x8] sm:$0xff] %vm186, %v937
  %972 = vst.msk [vmem:[#allocation2 + $0x10] sm:$0xff] %vm186, %v942
  %973 = vst.msk [vmem:[#allocation2 + $0x18] sm:$0xff] %vm186, %v947
  %974 = vst.msk [vmem:[#allocation2 + $0x20] sm:$0xff] %vm186, %v952
  %975 = vst.msk [vmem:[#allocation2 + $0x28] sm:$0xff] %vm186, %v957
  %976 = vst.msk [vmem:[#allocation2 + $0x30] sm:$0xff] %vm186, %v962
  %977 = vst.msk [vmem:[#allocation2 + $0x38] sm:$0xff] %vm186, %v967
  %v978 = vld [vmem:[#allocation2] sm:$0xff]
  %979 = vmatprep.subr.mxu0 0.0
  %980 = vmatpush1.msra.mxu0 0.0
  %981 = vmatprep.subr.mxu0 0.0
  %982 = vmatpush1.msra.mxu0 0.0
  %983 = vmatprep.subr.mxu0 0.0
  %984 = vmatpush1.msra.mxu0 0.0
  %985 = vmatprep.subr.mxu0 0.0
  %986 = vmatpush1.msra.mxu0 0.0
  %987 = vmatprep.subr.mxu0 0.0
  %988 = vmatpush1.msra.mxu0 0.0
  %989 = vmatprep.subr.mxu0 0.0
  %990 = vmatpush1.msra.mxu0 0.0
  %991 = vmatprep.subr.mxu0 0.0
  %992 = vmatpush1.msra.mxu0 0.0
  %993 = vmatprep.subr.mxu0 0.0
  %994 = vmatpush1.msra.mxu0 0.0
  %995 = vmatprep.subr.mxu0 0.0
  %996 = vmatpush1.msra.mxu0 0.0
  %997 = vmatprep.subr.mxu0 0.0
  %998 = vmatpush1.msra.mxu0 0.0
  %999 = vmatprep.subr.mxu0 0.0
  %1000 = vmatpush1.msra.mxu0 0.0
  %1001 = vmatprep.subr.mxu0 0.0
  %1002 = vmatpush1.msra.mxu0 0.0
  %1003 = vmatprep.subr.mxu0 0.0
  %1004 = vmatpush1.msra.mxu0 %v825
  %1005 = vmatprep.subr.mxu0 0.0
  %1006 = vmatpush1.msra.mxu0 %v824
  %1007 = vmatprep.subr.mxu0 0.0
  %1008 = vmatpush1.msra.mxu0 %v823
  %1009 = vmatprep.subr.mxu0 0.0
  %1010 = vmatpush1.msra.mxu0 %v822
  %1011 = vmatprep.subr.mxu0 0.0
  %1012 = vmatpush2.msra.mxu0 0.0
  %1013 = vmatprep.subr.mxu0 0.0
  %1014 = vmatpush2.msra.mxu0 0.0
  %1015 = vmatprep.subr.mxu0 0.0
  %1016 = vmatpush2.msra.mxu0 0.0
  %1017 = vmatprep.subr.mxu0 0.0
  %1018 = vmatpush2.msra.mxu0 0.0
  %1019 = vmatprep.subr.mxu0 0.0
  %1020 = vmatpush2.msra.mxu0 0.0
  %1021 = vmatprep.subr.mxu0 0.0
  %1022 = vmatpush2.msra.mxu0 0.0
  %1023 = vmatprep.subr.mxu0 0.0
  %1024 = vmatpush2.msra.mxu0 0.0
  %1025 = vmatprep.subr.mxu0 0.0
  %1026 = vmatpush2.msra.mxu0 0.0
  %1027 = vmatprep.subr.mxu0 0.0
  %1028 = vmatpush2.msra.mxu0 0.0
  %1029 = vmatprep.subr.mxu0 0.0
  %1030 = vmatpush2.msra.mxu0 0.0
  %1031 = vmatprep.subr.mxu0 0.0
  %1032 = vmatpush2.msra.mxu0 0.0
  %1033 = vmatprep.subr.mxu0 0.0
  %1034 = vmatpush2.msra.mxu0 0.0
  %1035 = vmatprep.subr.mxu0 0.0
  %1036 = vmatpush2.msra.mxu0 0.0
  %1037 = vmatprep.subr.mxu0 0.0
  %1038 = vmatpush2.msra.mxu0 0.0
  %1039 = vmatprep.subr.mxu0 0.0
  %1040 = vmatpush2.msra.mxu0 0.0
  %1041 = vmatprep.subr.mxu0 0.0
  %1042 = vmatpush2.msra.mxu0 0.0
  %1043 = vmatprep.mubr.f32.mxu0 0.0
  %1044 = vmatmul.mubr.f32.gmra.mxu0 %v197
  %v1045 = vpop.f32.mrf.mxu0
  %v1046 = vadd.f32 0.0, %v1045
  %v1047 = vpop.f32.mrf.mxu0
  %1048 = vdwg.mxu0
  %v1049 = vadd.f32 %v978, %v1046
  %v1050 = vtanh.pop %v1049
  %1051 = vst.msk [vmem:[#allocation2] sm:$0xff] %vm186, %v1050
  %v1052 = vld [vmem:[%s272] sm:$0xff]
  %v1054 = vsel %vm186, %v1050, 0
  %1056 = vmatprep.subr.mxu0 0.0
  %1057 = vmatpush1.msra.mxu0 0.0
  %1058 = vmatprep.subr.mxu0 0.0
  %1059 = vmatpush1.msra.mxu0 0.0
  %1060 = vmatprep.subr.mxu0 0.0
  %1061 = vmatpush1.msra.mxu0 0.0
  %1062 = vmatprep.subr.mxu0 0.0
  %1063 = vmatpush1.msra.mxu0 0.0
  %1064 = vmatprep.subr.mxu0 0.0
  %1065 = vmatpush1.msra.mxu0 0.0
  %1066 = vmatprep.subr.mxu0 0.0
  %1067 = vmatpush1.msra.mxu0 0.0
  %1068 = vmatprep.subr.mxu0 0.0
  %1069 = vmatpush1.msra.mxu0 0.0
  %1070 = vmatprep.subr.mxu0 0.0
  %1071 = vmatpush1.msra.mxu0 0.0
  %1072 = vmatprep.subr.mxu0 0.0
  %1073 = vmatpush1.msra.mxu0 0.0
  %1074 = vmatprep.subr.mxu0 0.0
  %1075 = vmatpush1.msra.mxu0 0.0
  %1076 = vmatprep.subr.mxu0 0.0
  %1077 = vmatpush1.msra.mxu0 0.0
  %1078 = vmatprep.subr.mxu0 0.0
  %1079 = vmatpush1.msra.mxu0 0.0
  %1080 = vmatprep.subr.mxu0 0.0
  %1081 = vmatpush1.msra.mxu0 %v825
  %1082 = vmatprep.subr.mxu0 0.0
  %1083 = vmatpush1.msra.mxu0 %v824
  %1084 = vmatprep.subr.mxu0 0.0
  %1085 = vmatpush1.msra.mxu0 %v823
  %1086 = vmatprep.subr.mxu0 0.0
  %1087 = vmatpush1.msra.mxu0 %v822
  %1088 = vmatprep.subr.mxu0 0.0
  %1089 = vmatpush2.msra.mxu0 0.0
  %1090 = vmatprep.subr.mxu0 0.0
  %1091 = vmatpush2.msra.mxu0 0.0
  %1092 = vmatprep.subr.mxu0 0.0
  %1093 = vmatpush2.msra.mxu0 0.0
  %1094 = vmatprep.subr.mxu0 0.0
  %1095 = vmatpush2.msra.mxu0 0.0
  %1096 = vmatprep.subr.mxu0 0.0
  %1097 = vmatpush2.msra.mxu0 0.0
  %1098 = vmatprep.subr.mxu0 0.0
  %1099 = vmatpush2.msra.mxu0 0.0
  %1100 = vmatprep.subr.mxu0 0.0
  %1101 = vmatpush2.msra.mxu0 0.0
  %1102 = vmatprep.subr.mxu0 0.0
  %1103 = vmatpush2.msra.mxu0 0.0
  %1104 = vmatprep.subr.mxu0 0.0
  %1105 = vmatpush2.msra.mxu0 0.0
  %1106 = vmatprep.subr.mxu0 0.0
  %1107 = vmatpush2.msra.mxu0 0.0
  %1108 = vmatprep.subr.mxu0 0.0
  %1109 = vmatpush2.msra.mxu0 0.0
  %1110 = vmatprep.subr.mxu0 0.0
  %1111 = vmatpush2.msra.mxu0 0.0
  %1112 = vmatprep.subr.mxu0 0.0
  %1113 = vmatpush2.msra.mxu0 0.0
  %1114 = vmatprep.subr.mxu0 0.0
  %1115 = vmatpush2.msra.mxu0 0.0
  %1116 = vmatprep.subr.mxu0 0.0
  %1117 = vmatpush2.msra.mxu0 0.0
  %1118 = vmatprep.subr.mxu0 0.0
  %1119 = vmatpush2.msra.mxu0 0.0
  %1120 = vmatprep.mubr.f32.mxu0 0.0
  %1121 = vmatmul.mubr.f32.gmra.mxu0 %v1054
  %v1122 = vpop.f32.mrf.mxu0
  %v1123 = vadd.f32 0.0, %v1122
  %v1124 = vpop.f32.mrf.mxu0
  %1125 = vdwg.mxu0
  %v1126 = vadd.f32 %v1052, %v1123
  %v1127 = vtanh.pop %v1126
  %1128 = vst.msk [vmem:[%s272] sm:$0xff] %vm186, %v1127
  %v1129 = vld [vmem:[%s350] sm:$0xff]
  %v1131 = vsel %vm186, %v1127, 0
  %1133 = vmatprep.subr.mxu0 0.0
  %1134 = vmatpush1.msra.mxu0 0.0
  %1135 = vmatprep.subr.mxu0 0.0
  %1136 = vmatpush1.msra.mxu0 0.0
  %1137 = vmatprep.subr.mxu0 0.0
  %1138 = vmatpush1.msra.mxu0 0.0
  %1139 = vmatprep.subr.mxu0 0.0
  %1140 = vmatpush1.msra.mxu0 0.0
  %1141 = vmatprep.subr.mxu0 0.0
  %1142 = vmatpush1.msra.mxu0 0.0
  %1143 = vmatprep.subr.mxu0 0.0
  %1144 = vmatpush1.msra.mxu0 0.0
  %1145 = vmatprep.subr.mxu0 0.0
  %1146 = vmatpush1.msra.mxu0 0.0
  %1147 = vmatprep.subr.mxu0 0.0
  %1148 = vmatpush1.msra.mxu0 0.0
  %1149 = vmatprep.subr.mxu0 0.0
  %1150 = vmatpush1.msra.mxu0 0.0
  %1151 = vmatprep.subr.mxu0 0.0
  %1152 = vmatpush1.msra.mxu0 0.0
  %1153 = vmatprep.subr.mxu0 0.0
  %1154 = vmatpush1.msra.mxu0 0.0
  %1155 = vmatprep.subr.mxu0 0.0
  %1156 = vmatpush1.msra.mxu0 0.0
  %1157 = vmatprep.subr.mxu0 0.0
  %1158 = vmatpush1.msra.mxu0 %v825
  %1159 = vmatprep.subr.mxu0 0.0
  %1160 = vmatpush1.msra.mxu0 %v824
  %1161 = vmatprep.subr.mxu0 0.0
  %1162 = vmatpush1.msra.mxu0 %v823
  %1163 = vmatprep.subr.mxu0 0.0
  %1164 = vmatpush1.msra.mxu0 %v822
  %1165 = vmatprep.subr.mxu0 0.0
  %1166 = vmatpush2.msra.mxu0 0.0
  %1167 = vmatprep.subr.mxu0 0.0
  %1168 = vmatpush2.msra.mxu0 0.0
  %1169 = vmatprep.subr.mxu0 0.0
  %1170 = vmatpush2.msra.mxu0 0.0
  %1171 = vmatprep.subr.mxu0 0.0
  %1172 = vmatpush2.msra.mxu0 0.0
  %1173 = vmatprep.subr.mxu0 0.0
  %1174 = vmatpush2.msra.mxu0 0.0
  %1175 = vmatprep.subr.mxu0 0.0
  %1176 = vmatpush2.msra.mxu0 0.0
  %1177 = vmatprep.subr.mxu0 0.0
  %1178 = vmatpush2.msra.mxu0 0.0
  %1179 = vmatprep.subr.mxu0 0.0
  %1180 = vmatpush2.msra.mxu0 0.0
  %1181 = vmatprep.subr.mxu0 0.0
  %1182 = vmatpush2.msra.mxu0 0.0
  %1183 = vmatprep.subr.mxu0 0.0
  %1184 = vmatpush2.msra.mxu0 0.0
  %1185 = vmatprep.subr.mxu0 0.0
  %1186 = vmatpush2.msra.mxu0 0.0
  %1187 = vmatprep.subr.mxu0 0.0
  %1188 = vmatpush2.msra.mxu0 0.0
  %1189 = vmatprep.subr.mxu0 0.0
  %1190 = vmatpush2.msra.mxu0 0.0
  %1191 = vmatprep.subr.mxu0 0.0
  %1192 = vmatpush2.msra.mxu0 0.0
  %1193 = vmatprep.subr.mxu0 0.0
  %1194 = vmatpush2.msra.mxu0 0.0
  %1195 = vmatprep.subr.mxu0 0.0
  %1196 = vmatpush2.msra.mxu0 0.0
  %1197 = vmatprep.mubr.f32.mxu0 0.0
  %1198 = vmatmul.mubr.f32.gmra.mxu0 %v1131
  %v1199 = vpop.f32.mrf.mxu0
  %v1200 = vadd.f32 0.0, %v1199
  %v1201 = vpop.f32.mrf.mxu0
  %1202 = vdwg.mxu0
  %v1203 = vadd.f32 %v1129, %v1200
  %v1204 = vtanh.pop %v1203
  %1205 = vst.msk [vmem:[%s350] sm:$0xff] %vm186, %v1204
  %v1206 = vld [vmem:[%s428] sm:$0xff]
  %v1208 = vsel %vm186, %v1204, 0
  %1210 = vmatprep.subr.mxu0 0.0
  %1211 = vmatpush1.msra.mxu0 0.0
  %1212 = vmatprep.subr.mxu0 0.0
  %1213 = vmatpush1.msra.mxu0 0.0
  %1214 = vmatprep.subr.mxu0 0.0
  %1215 = vmatpush1.msra.mxu0 0.0
  %1216 = vmatprep.subr.mxu0 0.0
  %1217 = vmatpush1.msra.mxu0 0.0
  %1218 = vmatprep.subr.mxu0 0.0
  %1219 = vmatpush1.msra.mxu0 0.0
  %1220 = vmatprep.subr.mxu0 0.0
  %1221 = vmatpush1.msra.mxu0 0.0
  %1222 = vmatprep.subr.mxu0 0.0
  %1223 = vmatpush1.msra.mxu0 0.0
  %1224 = vmatprep.subr.mxu0 0.0
  %1225 = vmatpush1.msra.mxu0 0.0
  %1226 = vmatprep.subr.mxu0 0.0
  %1227 = vmatpush1.msra.mxu0 0.0
  %1228 = vmatprep.subr.mxu0 0.0
  %1229 = vmatpush1.msra.mxu0 0.0
  %1230 = vmatprep.subr.mxu0 0.0
  %1231 = vmatpush1.msra.mxu0 0.0
  %1232 = vmatprep.subr.mxu0 0.0
  %1233 = vmatpush1.msra.mxu0 0.0
  %1234 = vmatprep.subr.mxu0 0.0
  %1235 = vmatpush1.msra.mxu0 %v825
  %1236 = vmatprep.subr.mxu0 0.0
  %1237 = vmatpush1.msra.mxu0 %v824
  %1238 = vmatprep.subr.mxu0 0.0
  %1239 = vmatpush1.msra.mxu0 %v823
  %1240 = vmatprep.subr.mxu0 0.0
  %1241 = vmatpush1.msra.mxu0 %v822
  %1242 = vmatprep.subr.mxu0 0.0
  %1243 = vmatpush2.msra.mxu0 0.0
  %1244 = vmatprep.subr.mxu0 0.0
  %1245 = vmatpush2.msra.mxu0 0.0
  %1246 = vmatprep.subr.mxu0 0.0
  %1247 = vmatpush2.msra.mxu0 0.0
  %1248 = vmatprep.subr.mxu0 0.0
  %1249 = vmatpush2.msra.mxu0 0.0
  %1250 = vmatprep.subr.mxu0 0.0
  %1251 = vmatpush2.msra.mxu0 0.0
  %1252 = vmatprep.subr.mxu0 0.0
  %1253 = vmatpush2.msra.mxu0 0.0
  %1254 = vmatprep.subr.mxu0 0.0
  %1255 = vmatpush2.msra.mxu0 0.0
  %1256 = vmatprep.subr.mxu0 0.0
  %1257 = vmatpush2.msra.mxu0 0.0
  %1258 = vmatprep.subr.mxu0 0.0
  %1259 = vmatpush2.msra.mxu0 0.0
  %1260 = vmatprep.subr.mxu0 0.0
  %1261 = vmatpush2.msra.mxu0 0.0
  %1262 = vmatprep.subr.mxu0 0.0
  %1263 = vmatpush2.msra.mxu0 0.0
  %1264 = vmatprep.subr.mxu0 0.0
  %1265 = vmatpush2.msra.mxu0 0.0
  %1266 = vmatprep.subr.mxu0 0.0
  %1267 = vmatpush2.msra.mxu0 0.0
  %1268 = vmatprep.subr.mxu0 0.0
  %1269 = vmatpush2.msra.mxu0 0.0
  %1270 = vmatprep.subr.mxu0 0.0
  %1271 = vmatpush2.msra.mxu0 0.0
  %1272 = vmatprep.subr.mxu0 0.0
  %1273 = vmatpush2.msra.mxu0 0.0
  %1274 = vmatprep.mubr.f32.mxu0 0.0
  %1275 = vmatmul.mubr.f32.gmra.mxu0 %v1208
  %v1276 = vpop.f32.mrf.mxu0
  %v1277 = vadd.f32 0.0, %v1276
  %v1278 = vpop.f32.mrf.mxu0
  %1279 = vdwg.mxu0
  %v1280 = vadd.f32 %v1206, %v1277
  %v1281 = vtanh.pop %v1280
  %1282 = vst.msk [vmem:[%s428] sm:$0xff] %vm186, %v1281
  %v1283 = vld [vmem:[%s506] sm:$0xff]
  %v1285 = vsel %vm186, %v1281, 0
  %1287 = vmatprep.subr.mxu0 0.0
  %1288 = vmatpush1.msra.mxu0 0.0
  %1289 = vmatprep.subr.mxu0 0.0
  %1290 = vmatpush1.msra.mxu0 0.0
  %1291 = vmatprep.subr.mxu0 0.0
  %1292 = vmatpush1.msra.mxu0 0.0
  %1293 = vmatprep.subr.mxu0 0.0
  %1294 = vmatpush1.msra.mxu0 0.0
  %1295 = vmatprep.subr.mxu0 0.0
  %1296 = vmatpush1.msra.mxu0 0.0
  %1297 = vmatprep.subr.mxu0 0.0
  %1298 = vmatpush1.msra.mxu0 0.0
  %1299 = vmatprep.subr.mxu0 0.0
  %1300 = vmatpush1.msra.mxu0 0.0
  %1301 = vmatprep.subr.mxu0 0.0
  %1302 = vmatpush1.msra.mxu0 0.0
  %1303 = vmatprep.subr.mxu0 0.0
  %1304 = vmatpush1.msra.mxu0 0.0
  %1305 = vmatprep.subr.mxu0 0.0
  %1306 = vmatpush1.msra.mxu0 0.0
  %1307 = vmatprep.subr.mxu0 0.0
  %1308 = vmatpush1.msra.mxu0 0.0
  %1309 = vmatprep.subr.mxu0 0.0
  %1310 = vmatpush1.msra.mxu0 0.0
  %1311 = vmatprep.subr.mxu0 0.0
  %1312 = vmatpush1.msra.mxu0 %v825
  %1313 = vmatprep.subr.mxu0 0.0
  %1314 = vmatpush1.msra.mxu0 %v824
  %1315 = vmatprep.subr.mxu0 0.0
  %1316 = vmatpush1.msra.mxu0 %v823
  %1317 = vmatprep.subr.mxu0 0.0
  %1318 = vmatpush1.msra.mxu0 %v822
  %1319 = vmatprep.subr.mxu0 0.0
  %1320 = vmatpush2.msra.mxu0 0.0
  %1321 = vmatprep.subr.mxu0 0.0
  %1322 = vmatpush2.msra.mxu0 0.0
  %1323 = vmatprep.subr.mxu0 0.0
  %1324 = vmatpush2.msra.mxu0 0.0
  %1325 = vmatprep.subr.mxu0 0.0
  %1326 = vmatpush2.msra.mxu0 0.0
  %1327 = vmatprep.subr.mxu0 0.0
  %1328 = vmatpush2.msra.mxu0 0.0
  %1329 = vmatprep.subr.mxu0 0.0
  %1330 = vmatpush2.msra.mxu0 0.0
  %1331 = vmatprep.subr.mxu0 0.0
  %1332 = vmatpush2.msra.mxu0 0.0
  %1333 = vmatprep.subr.mxu0 0.0
  %1334 = vmatpush2.msra.mxu0 0.0
  %1335 = vmatprep.subr.mxu0 0.0
  %1336 = vmatpush2.msra.mxu0 0.0
  %1337 = vmatprep.subr.mxu0 0.0
  %1338 = vmatpush2.msra.mxu0 0.0
  %1339 = vmatprep.subr.mxu0 0.0
  %1340 = vmatpush2.msra.mxu0 0.0
  %1341 = vmatprep.subr.mxu0 0.0
  %1342 = vmatpush2.msra.mxu0 0.0
  %1343 = vmatprep.subr.mxu0 0.0
  %1344 = vmatpush2.msra.mxu0 0.0
  %1345 = vmatprep.subr.mxu0 0.0
  %1346 = vmatpush2.msra.mxu0 0.0
  %1347 = vmatprep.subr.mxu0 0.0
  %1348 = vmatpush2.msra.mxu0 0.0
  %1349 = vmatprep.subr.mxu0 0.0
  %1350 = vmatpush2.msra.mxu0 0.0
  %1351 = vmatprep.mubr.f32.mxu0 0.0
  %1352 = vmatmul.mubr.f32.gmra.mxu0 %v1285
  %v1353 = vpop.f32.mrf.mxu0
  %v1354 = vadd.f32 0.0, %v1353
  %v1355 = vpop.f32.mrf.mxu0
  %1356 = vdwg.mxu0
  %v1357 = vadd.f32 %v1283, %v1354
  %v1358 = vtanh.pop %v1357
  %1359 = vst.msk [vmem:[%s506] sm:$0xff] %vm186, %v1358
  %v1360 = vld [vmem:[%s584] sm:$0xff]
  %v1362 = vsel %vm186, %v1358, 0
  %1364 = vmatprep.subr.mxu0 0.0
  %1365 = vmatpush1.msra.mxu0 0.0
  %1366 = vmatprep.subr.mxu0 0.0
  %1367 = vmatpush1.msra.mxu0 0.0
  %1368 = vmatprep.subr.mxu0 0.0
  %1369 = vmatpush1.msra.mxu0 0.0
  %1370 = vmatprep.subr.mxu0 0.0
  %1371 = vmatpush1.msra.mxu0 0.0
  %1372 = vmatprep.subr.mxu0 0.0
  %1373 = vmatpush1.msra.mxu0 0.0
  %1374 = vmatprep.subr.mxu0 0.0
  %1375 = vmatpush1.msra.mxu0 0.0
  %1376 = vmatprep.subr.mxu0 0.0
  %1377 = vmatpush1.msra.mxu0 0.0
  %1378 = vmatprep.subr.mxu0 0.0
  %1379 = vmatpush1.msra.mxu0 0.0
  %1380 = vmatprep.subr.mxu0 0.0
  %1381 = vmatpush1.msra.mxu0 0.0
  %1382 = vmatprep.subr.mxu0 0.0
  %1383 = vmatpush1.msra.mxu0 0.0
  %1384 = vmatprep.subr.mxu0 0.0
  %1385 = vmatpush1.msra.mxu0 0.0
  %1386 = vmatprep.subr.mxu0 0.0
  %1387 = vmatpush1.msra.mxu0 0.0
  %1388 = vmatprep.subr.mxu0 0.0
  %1389 = vmatpush1.msra.mxu0 %v825
  %1390 = vmatprep.subr.mxu0 0.0
  %1391 = vmatpush1.msra.mxu0 %v824
  %1392 = vmatprep.subr.mxu0 0.0
  %1393 = vmatpush1.msra.mxu0 %v823
  %1394 = vmatprep.subr.mxu0 0.0
  %1395 = vmatpush1.msra.mxu0 %v822
  %1396 = vmatprep.subr.mxu0 0.0
  %1397 = vmatpush2.msra.mxu0 0.0
  %1398 = vmatprep.subr.mxu0 0.0
  %1399 = vmatpush2.msra.mxu0 0.0
  %1400 = vmatprep.subr.mxu0 0.0
  %1401 = vmatpush2.msra.mxu0 0.0
  %1402 = vmatprep.subr.mxu0 0.0
  %1403 = vmatpush2.msra.mxu0 0.0
  %1404 = vmatprep.subr.mxu0 0.0
  %1405 = vmatpush2.msra.mxu0 0.0
  %1406 = vmatprep.subr.mxu0 0.0
  %1407 = vmatpush2.msra.mxu0 0.0
  %1408 = vmatprep.subr.mxu0 0.0
  %1409 = vmatpush2.msra.mxu0 0.0
  %1410 = vmatprep.subr.mxu0 0.0
  %1411 = vmatpush2.msra.mxu0 0.0
  %1412 = vmatprep.subr.mxu0 0.0
  %1413 = vmatpush2.msra.mxu0 0.0
  %1414 = vmatprep.subr.mxu0 0.0
  %1415 = vmatpush2.msra.mxu0 0.0
  %1416 = vmatprep.subr.mxu0 0.0
  %1417 = vmatpush2.msra.mxu0 0.0
  %1418 = vmatprep.subr.mxu0 0.0
  %1419 = vmatpush2.msra.mxu0 0.0
  %1420 = vmatprep.subr.mxu0 0.0
  %1421 = vmatpush2.msra.mxu0 0.0
  %1422 = vmatprep.subr.mxu0 0.0
  %1423 = vmatpush2.msra.mxu0 0.0
  %1424 = vmatprep.subr.mxu0 0.0
  %1425 = vmatpush2.msra.mxu0 0.0
  %1426 = vmatprep.subr.mxu0 0.0
  %1427 = vmatpush2.msra.mxu0 0.0
  %1428 = vmatprep.mubr.f32.mxu0 0.0
  %1429 = vmatmul.mubr.f32.gmra.mxu0 %v1362
  %v1430 = vpop.f32.mrf.mxu0
  %v1431 = vadd.f32 0.0, %v1430
  %v1432 = vpop.f32.mrf.mxu0
  %1433 = vdwg.mxu0
  %v1434 = vadd.f32 %v1360, %v1431
  %v1435 = vtanh.pop %v1434
  %1436 = vst.msk [vmem:[%s584] sm:$0xff] %vm186, %v1435
  %v1437 = vld [vmem:[%s662] sm:$0xff]
  %v1439 = vsel %vm186, %v1435, 0
  %1441 = vmatprep.subr.mxu0 0.0
  %1442 = vmatpush1.msra.mxu0 0.0
  %1443 = vmatprep.subr.mxu0 0.0
  %1444 = vmatpush1.msra.mxu0 0.0
  %1445 = vmatprep.subr.mxu0 0.0
  %1446 = vmatpush1.msra.mxu0 0.0
  %1447 = vmatprep.subr.mxu0 0.0
  %1448 = vmatpush1.msra.mxu0 0.0
  %1449 = vmatprep.subr.mxu0 0.0
  %1450 = vmatpush1.msra.mxu0 0.0
  %1451 = vmatprep.subr.mxu0 0.0
  %1452 = vmatpush1.msra.mxu0 0.0
  %1453 = vmatprep.subr.mxu0 0.0
  %1454 = vmatpush1.msra.mxu0 0.0
  %1455 = vmatprep.subr.mxu0 0.0
  %1456 = vmatpush1.msra.mxu0 0.0
  %1457 = vmatprep.subr.mxu0 0.0
  %1458 = vmatpush1.msra.mxu0 0.0
  %1459 = vmatprep.subr.mxu0 0.0
  %1460 = vmatpush1.msra.mxu0 0.0
  %1461 = vmatprep.subr.mxu0 0.0
  %1462 = vmatpush1.msra.mxu0 0.0
  %1463 = vmatprep.subr.mxu0 0.0
  %1464 = vmatpush1.msra.mxu0 0.0
  %1465 = vmatprep.subr.mxu0 0.0
  %1466 = vmatpush1.msra.mxu0 %v825
  %1467 = vmatprep.subr.mxu0 0.0
  %1468 = vmatpush1.msra.mxu0 %v824
  %1469 = vmatprep.subr.mxu0 0.0
  %1470 = vmatpush1.msra.mxu0 %v823
  %1471 = vmatprep.subr.mxu0 0.0
  %1472 = vmatpush1.msra.mxu0 %v822
  %1473 = vmatprep.subr.mxu0 0.0
  %1474 = vmatpush2.msra.mxu0 0.0
  %1475 = vmatprep.subr.mxu0 0.0
  %1476 = vmatpush2.msra.mxu0 0.0
  %1477 = vmatprep.subr.mxu0 0.0
  %1478 = vmatpush2.msra.mxu0 0.0
  %1479 = vmatprep.subr.mxu0 0.0
  %1480 = vmatpush2.msra.mxu0 0.0
  %1481 = vmatprep.subr.mxu0 0.0
  %1482 = vmatpush2.msra.mxu0 0.0
  %1483 = vmatprep.subr.mxu0 0.0
  %1484 = vmatpush2.msra.mxu0 0.0
  %1485 = vmatprep.subr.mxu0 0.0
  %1486 = vmatpush2.msra.mxu0 0.0
  %1487 = vmatprep.subr.mxu0 0.0
  %1488 = vmatpush2.msra.mxu0 0.0
  %1489 = vmatprep.subr.mxu0 0.0
  %1490 = vmatpush2.msra.mxu0 0.0
  %1491 = vmatprep.subr.mxu0 0.0
  %1492 = vmatpush2.msra.mxu0 0.0
  %1493 = vmatprep.subr.mxu0 0.0
  %1494 = vmatpush2.msra.mxu0 0.0
  %1495 = vmatprep.subr.mxu0 0.0
  %1496 = vmatpush2.msra.mxu0 0.0
  %1497 = vmatprep.subr.mxu0 0.0
  %1498 = vmatpush2.msra.mxu0 0.0
  %1499 = vmatprep.subr.mxu0 0.0
  %1500 = vmatpush2.msra.mxu0 0.0
  %1501 = vmatprep.subr.mxu0 0.0
  %1502 = vmatpush2.msra.mxu0 0.0
  %1503 = vmatprep.subr.mxu0 0.0
  %1504 = vmatpush2.msra.mxu0 0.0
  %1505 = vmatprep.mubr.f32.mxu0 0.0
  %1506 = vmatmul.mubr.f32.gmra.mxu0 %v1439
  %v1507 = vpop.f32.mrf.mxu0
  %v1508 = vadd.f32 0.0, %v1507
  %v1509 = vpop.f32.mrf.mxu0
  %1510 = vdwg.mxu0
  %v1511 = vadd.f32 %v1437, %v1508
  %v1512 = vtanh.pop %v1511
  %1513 = vst.msk [vmem:[%s662] sm:$0xff] %vm186, %v1512
  %v1514 = vld [vmem:[%s740] sm:$0xff]
  %v1516 = vsel %vm186, %v1512, 0
  %1518 = vmatprep.subr.mxu0 0.0
  %1519 = vmatpush1.msra.mxu0 0.0
  %1520 = vmatprep.subr.mxu0 0.0
  %1521 = vmatpush1.msra.mxu0 0.0
  %1522 = vmatprep.subr.mxu0 0.0
  %1523 = vmatpush1.msra.mxu0 0.0
  %1524 = vmatprep.subr.mxu0 0.0
  %1525 = vmatpush1.msra.mxu0 0.0
  %1526 = vmatprep.subr.mxu0 0.0
  %1527 = vmatpush1.msra.mxu0 0.0
  %1528 = vmatprep.subr.mxu0 0.0
  %1529 = vmatpush1.msra.mxu0 0.0
  %1530 = vmatprep.subr.mxu0 0.0
  %1531 = vmatpush1.msra.mxu0 0.0
  %1532 = vmatprep.subr.mxu0 0.0
  %1533 = vmatpush1.msra.mxu0 0.0
  %1534 = vmatprep.subr.mxu0 0.0
  %1535 = vmatpush1.msra.mxu0 0.0
  %1536 = vmatprep.subr.mxu0 0.0
  %1537 = vmatpush1.msra.mxu0 0.0
  %1538 = vmatprep.subr.mxu0 0.0
  %1539 = vmatpush1.msra.mxu0 0.0
  %1540 = vmatprep.subr.mxu0 0.0
  %1541 = vmatpush1.msra.mxu0 0.0
  %1542 = vmatprep.subr.mxu0 0.0
  %1543 = vmatpush1.msra.mxu0 %v825
  %1544 = vmatprep.subr.mxu0 0.0
  %1545 = vmatpush1.msra.mxu0 %v824
  %1546 = vmatprep.subr.mxu0 0.0
  %1547 = vmatpush1.msra.mxu0 %v823
  %1548 = vmatprep.subr.mxu0 0.0
  %1549 = vmatpush1.msra.mxu0 %v822
  %1550 = vmatprep.subr.mxu0 0.0
  %1551 = vmatpush2.msra.mxu0 0.0
  %1552 = vmatprep.subr.mxu0 0.0
  %1553 = vmatpush2.msra.mxu0 0.0
  %1554 = vmatprep.subr.mxu0 0.0
  %1555 = vmatpush2.msra.mxu0 0.0
  %1556 = vmatprep.subr.mxu0 0.0
  %1557 = vmatpush2.msra.mxu0 0.0
  %1558 = vmatprep.subr.mxu0 0.0
  %1559 = vmatpush2.msra.mxu0 0.0
  %1560 = vmatprep.subr.mxu0 0.0
  %1561 = vmatpush2.msra.mxu0 0.0
  %1562 = vmatprep.subr.mxu0 0.0
  %1563 = vmatpush2.msra.mxu0 0.0
  %1564 = vmatprep.subr.mxu0 0.0
  %1565 = vmatpush2.msra.mxu0 0.0
  %1566 = vmatprep.subr.mxu0 0.0
  %1567 = vmatpush2.msra.mxu0 0.0
  %1568 = vmatprep.subr.mxu0 0.0
  %1569 = vmatpush2.msra.mxu0 0.0
  %1570 = vmatprep.subr.mxu0 0.0
  %1571 = vmatpush2.msra.mxu0 0.0
  %1572 = vmatprep.subr.mxu0 0.0
  %1573 = vmatpush2.msra.mxu0 0.0
  %1574 = vmatprep.subr.mxu0 0.0
  %1575 = vmatpush2.msra.mxu0 0.0
  %1576 = vmatprep.subr.mxu0 0.0
  %1577 = vmatpush2.msra.mxu0 0.0
  %1578 = vmatprep.subr.mxu0 0.0
  %1579 = vmatpush2.msra.mxu0 0.0
  %1580 = vmatprep.subr.mxu0 0.0
  %1581 = vmatpush2.msra.mxu0 0.0
  %1582 = vmatprep.mubr.f32.mxu0 0.0
  %1583 = vmatmul.mubr.f32.gmra.mxu0 %v1516
  %v1584 = vpop.f32.mrf.mxu0
  %v1585 = vadd.f32 0.0, %v1584
  %v1586 = vpop.f32.mrf.mxu0
  %1587 = vdwg.mxu0
  %v1588 = vadd.f32 %v1514, %v1585
  %v1589 = vtanh.pop %v1588
  %1590 = vst.msk [vmem:[%s740] sm:$0xff] %vm186, %v1589
  %v1591 = vld [vmem:[%s7] sm:$0xff]
  %v1592 = vld [vmem:[%s7 + $0x8] sm:$0xff]
  %v1593 = vld [vmem:[%s7 + $0x10] sm:$0xff]
  %v1594 = vld [vmem:[%s7 + $0x18] sm:$0xff]
  %v1595 = vld [vmem:[%s8] sm:$0x1]
  %v1596 = vld [vmem:[#allocation2] sm:$0xff]
  %v1597 = vld [vmem:[#allocation2 + $0x8] sm:$0xff]
  %v1598 = vld [vmem:[#allocation2 + $0x10] sm:$0xff]
  %v1599 = vld [vmem:[#allocation2 + $0x18] sm:$0xff]
  %v1600 = vld [vmem:[#allocation2 + $0x20] sm:$0xff]
  %v1601 = vld [vmem:[#allocation2 + $0x28] sm:$0xff]
  %v1602 = vld [vmem:[#allocation2 + $0x30] sm:$0xff]
  %v1603 = vld [vmem:[#allocation2 + $0x38] sm:$0xff]
  %v1605 = vlaneseq
  %v1606 = vshrl.u32 %v1605, 7
  %v1607 = vsub.s32 0, %v1606
  %v1608 = vrot.slane %v1595, %v1607
  %v1611 = vsel %vm186, %v1596, 0
  %v1614 = vsel %vm186, %v1597, 0
  %v1617 = vsel %vm186, %v1598, 0
  %v1620 = vsel %vm186, %v1599, 0
  %v1623 = vsel %vm186, %v1600, 0
  %v1626 = vsel %vm186, %v1601, 0
  %v1629 = vsel %vm186, %v1602, 0
  %v1632 = vsel %vm186, %v1603, 0
  %1634 = vmatprep.subr.mxu0 0.0
  %1635 = vmatpush1.msra.mxu0 0.0
  %1636 = vmatprep.subr.mxu0 0.0
  %1637 = vmatpush1.msra.mxu0 0.0
  %1638 = vmatprep.subr.mxu0 0.0
  %1639 = vmatpush1.msra.mxu0 0.0
  %1640 = vmatprep.subr.mxu0 0.0
  %1641 = vmatpush1.msra.mxu0 0.0
  %1642 = vmatprep.subr.mxu0 0.0
  %1643 = vmatpush1.msra.mxu0 0.0
  %1644 = vmatprep.subr.mxu0 0.0
  %1645 = vmatpush1.msra.mxu0 0.0
  %1646 = vmatprep.subr.mxu0 0.0
  %1647 = vmatpush1.msra.mxu0 0.0
  %1648 = vmatprep.subr.mxu0 0.0
  %1649 = vmatpush1.msra.mxu0 0.0
  %1650 = vmatprep.subr.mxu0 0.0
  %1651 = vmatpush1.msra.mxu0 0.0
  %1652 = vmatprep.subr.mxu0 0.0
  %1653 = vmatpush1.msra.mxu0 0.0
  %1654 = vmatprep.subr.mxu0 0.0
  %1655 = vmatpush1.msra.mxu0 0.0
  %1656 = vmatprep.subr.mxu0 0.0
  %1657 = vmatpush1.msra.mxu0 0.0
  %1658 = vmatprep.subr.mxu0 0.0
  %1659 = vmatpush1.msra.mxu0 %v1594
  %1660 = vmatprep.subr.mxu0 0.0
  %1661 = vmatpush1.msra.mxu0 %v1593
  %1662 = vmatprep.subr.mxu0 0.0
  %1663 = vmatpush1.msra.mxu0 %v1592
  %1664 = vmatprep.subr.mxu0 0.0
  %1665 = vmatpush1.msra.mxu0 %v1591
  %1666 = vmatprep.subr.mxu0 0.0
  %1667 = vmatpush2.msra.mxu0 0.0
  %1668 = vmatprep.subr.mxu0 0.0
  %1669 = vmatpush2.msra.mxu0 0.0
  %1670 = vmatprep.subr.mxu0 0.0
  %1671 = vmatpush2.msra.mxu0 0.0
  %1672 = vmatprep.subr.mxu0 0.0
  %1673 = vmatpush2.msra.mxu0 0.0
  %1674 = vmatprep.subr.mxu0 0.0
  %1675 = vmatpush2.msra.mxu0 0.0
  %1676 = vmatprep.subr.mxu0 0.0
  %1677 = vmatpush2.msra.mxu0 0.0
  %1678 = vmatprep.subr.mxu0 0.0
  %1679 = vmatpush2.msra.mxu0 0.0
  %1680 = vmatprep.subr.mxu0 0.0
  %1681 = vmatpush2.msra.mxu0 0.0
  %1682 = vmatprep.subr.mxu0 0.0
  %1683 = vmatpush2.msra.mxu0 0.0
  %1684 = vmatprep.subr.mxu0 0.0
  %1685 = vmatpush2.msra.mxu0 0.0
  %1686 = vmatprep.subr.mxu0 0.0
  %1687 = vmatpush2.msra.mxu0 0.0
  %1688 = vmatprep.subr.mxu0 0.0
  %1689 = vmatpush2.msra.mxu0 0.0
  %1690 = vmatprep.subr.mxu0 0.0
  %1691 = vmatpush2.msra.mxu0 0.0
  %1692 = vmatprep.subr.mxu0 0.0
  %1693 = vmatpush2.msra.mxu0 0.0
  %1694 = vmatprep.subr.mxu0 0.0
  %1695 = vmatpush2.msra.mxu0 0.0
  %1696 = vmatprep.subr.mxu0 0.0
  %1697 = vmatpush2.msra.mxu0 0.0
  %1698 = vmatprep.mubr.f32.mxu0 0.0
  %1699 = vmatmul.mubr.f32.gmra.mxu0 %v1611
  %v1700 = vpop.f32.mrf.mxu0
  %v1701 = vadd.f32 %v1608, %v1700
  %v1702 = vpop.f32.mrf.mxu0
  %1703 = vmatprep.mubr.f32.mxu0 0.0
  %1704 = vmatmul.mubr.f32.gmra.mxu0 %v1614
  %v1705 = vpop.f32.mrf.mxu0
  %v1706 = vadd.f32 %v1608, %v1705
  %v1707 = vpop.f32.mrf.mxu0
  %1708 = vmatprep.mubr.f32.mxu0 0.0
  %1709 = vmatmul.mubr.f32.gmra.mxu0 %v1617
  %v1710 = vpop.f32.mrf.mxu0
  %v1711 = vadd.f32 %v1608, %v1710
  %v1712 = vpop.f32.mrf.mxu0
  %1713 = vmatprep.mubr.f32.mxu0 0.0
  %1714 = vmatmul.mubr.f32.gmra.mxu0 %v1620
  %v1715 = vpop.f32.mrf.mxu0
  %v1716 = vadd.f32 %v1608, %v1715
  %v1717 = vpop.f32.mrf.mxu0
  %1718 = vmatprep.mubr.f32.mxu0 0.0
  %1719 = vmatmul.mubr.f32.gmra.mxu0 %v1623
  %v1720 = vpop.f32.mrf.mxu0
  %v1721 = vadd.f32 %v1608, %v1720
  %v1722 = vpop.f32.mrf.mxu0
  %1723 = vmatprep.mubr.f32.mxu0 0.0
  %1724 = vmatmul.mubr.f32.gmra.mxu0 %v1626
  %v1725 = vpop.f32.mrf.mxu0
  %v1726 = vadd.f32 %v1608, %v1725
  %v1727 = vpop.f32.mrf.mxu0
  %1728 = vmatprep.mubr.f32.mxu0 0.0
  %1729 = vmatmul.mubr.f32.gmra.mxu0 %v1629
  %v1730 = vpop.f32.mrf.mxu0
  %v1731 = vadd.f32 %v1608, %v1730
  %v1732 = vpop.f32.mrf.mxu0
  %1733 = vmatprep.mubr.f32.mxu0 0.0
  %1734 = vmatmul.mubr.f32.gmra.mxu0 %v1632
  %v1735 = vpop.f32.mrf.mxu0
  %v1736 = vadd.f32 %v1608, %v1735
  %v1737 = vpop.f32.mrf.mxu0
  %1738 = vdwg.mxu0
  %1739 = vst [vmem:[%s9] sm:$0xff] %v1701
  %1740 = vst [vmem:[%s9 + $0x8] sm:$0xff] %v1706
  %1741 = vst [vmem:[%s9 + $0x10] sm:$0xff] %v1711
  %1742 = vst [vmem:[%s9 + $0x18] sm:$0xff] %v1716
  %1743 = vst [vmem:[%s9 + $0x20] sm:$0xff] %v1721
  %1744 = vst [vmem:[%s9 + $0x28] sm:$0xff] %v1726
  %1745 = vst [vmem:[%s9 + $0x30] sm:$0xff] %v1731
  %1746 = vst [vmem:[%s9 + $0x38] sm:$0xff] %v1736
  // Predicated region
  $region38: #{my_model_forward.1} parent=0 // pred_check
    _
  $region39: #{my_model_forward.1} parent=0 // pred_check_branch
    %1748 = sbr.rel (0) target = $region41
  $region40: #{my_model_forward.1} parent=0 // pred_region
    _
  $region41: #{my_model_forward.1} parent=0 // pred_fallthru
    _
  // Predicated region
  $region42: #{my_model_forward.1} parent=0 // pred_check
    _
  $region43: #{my_model_forward.1} parent=0 // pred_check_branch
    %1750 = sbr.rel (0) target = $region45
  $region44: #{my_model_forward.1} parent=0 // pred_region
    _
  $region45: #{my_model_forward.1} parent=0 // pred_fallthru
    _

</llo_original>
